<compile_context>
chip_gen: v5e
topology: v5e:2x2
jax: 0.10.0
libtpu: 0.0.40
codegen_flags: <defaults>
</compile_context>

<pallas_src>
import functools

import jax
import jax.numpy as jnp
from jax import lax
from jax.experimental import pallas as pl
from jax.experimental.pallas import tpu as pltpu


def _discriminator_kernel(u_ref, b_ref, h1_ref, h2_ref, h3_ref, h4_ref, out_ref):
    """One grid step: bilinear scores for one tile_n-row slab of nodes.

    u_ref  : (n_h, 2) f32   col 0 = W @ c1, col 1 = W @ c2   (VMEM, resident)
    b_ref  : (1,)     f32   bilinear bias                    (SMEM scalar)
    h*_ref : (tile_n, n_h)  node-embedding tiles             (VMEM, pipelined)
    out_ref: (tile_n, 4) f32  cols = [sc_1, sc_2, sc_3, sc_4]
    """
    b = b_ref[0]
    u1 = u_ref[:, 0:1]                        # (n_h, 1)  = W @ c1
    u2 = u_ref[:, 1:2]                        # (n_h, 1)  = W @ c2

    # Canonical (M, K) x (K, N) contraction: the big h tile is the MXU LHS and the
    # tiny (n_h, 1) vector is the RHS -> no transpose of the (tile_n, n_h) tile.
    dn = (((1,), (0,)), ((), ()))
    dot = functools.partial(
        lax.dot_general,
        dimension_numbers=dn,
        preferred_element_type=jnp.float32,
        precision=lax.Precision.HIGHEST,
    )

    def f32(ref):
        # Keep the dot fully in f32 (matches the reference even for bf16 inputs);
        # the cast is a VPU op well under the DMA time of this HBM-bound kernel.
        return ref[...].astype(jnp.float32)

    sc1 = dot(f32(h2_ref), u1)                # f_k(h2, c1)   (tile_n, 1)
    sc2 = dot(f32(h1_ref), u2)                # f_k(h1, c2)
    sc3 = dot(f32(h4_ref), u1)                # f_k(h4, c1)
    sc4 = dot(f32(h3_ref), u2)                # f_k(h3, c2)

    # Single (tile_n, 4) store instead of four sublane-masked row stores.
    out_ref[...] = jnp.concatenate([sc1, sc2, sc3, sc4], axis=1) + b


def _round_up(x, m):
    return -(-x // m) * m


def _pick_tile_n(n_rows, n_h, itemsize):
    """Byte-targeted tile size.

    Largest tile whose double-buffered working set fits the VMEM budget, while
    targeting ~8 MiB of input DMA per grid step so the ~0.35 us/step fixed cost
    stays negligible (matters most on v7x's 3.2 TB/s HBM)."""
    try:
        vmem_cap = int(pltpu.get_tpu_info().vmem_capacity_bytes)
    except Exception:                     # interpret mode / non-TPU backend
        vmem_cap = 64 << 20               # v7x per-TC VMEM (most restrictive)
    budget = min(vmem_cap // 2, 32 << 20)

    # Double-buffered working set per output row:
    #   4 h inputs x 2 buffers x n_h x itemsize  +  (4,) f32 out x 2 buffers.
    per_row = 4 * 2 * n_h * itemsize + 2 * 4 * 4
    tile_budget = max(128, (budget // per_row) // 128 * 128)

    # ~8 MiB of input payload per step (4 h tiles of tile_n x n_h each).
    target_rows = _round_up(max(1, (8 << 20) // (4 * n_h * itemsize)), 128)

    tile = min(tile_budget, target_rows)
    # Never tile past the (128-padded) problem size.
    return min(tile, _round_up(n_rows, 128))


def _dimension_semantics_options():
    """Grid-axis semantics to try, strongest first.

    CORE_PARALLEL actually splits the grid across TensorCores (v7x has 2 TCs per
    chip); plain "parallel" is a near-no-op hint on single-TC v5e/v6e.  The safe
    string fallback is always included."""
    opts = []
    try:
        kind = jax.devices()[0].device_kind.lower()
    except Exception:
        kind = ""
    if ("v7" in kind or "7x" in kind) and hasattr(pltpu, "CORE_PARALLEL"):
        opts.append((pltpu.CORE_PARALLEL,))
    opts.append(("parallel",))
    return opts


def discriminator_forward(c1, c2, h1, h2, h3, h4, weight, bias, *, tile_n=None):
    """Pallas forward of mvgrl.Discriminator.

    c1, c2: (n_h,); h1..h4: (N, n_h); weight: (1, n_h, n_h); bias: (1,).
    Returns logits of shape (4*N,) == concat(sc_1, sc_2, sc_3, sc_4).
    h1..h4 are consumed in their native dtype (f32 or bf16); the bilinear math
    runs in f32 (u stays f32, f32 MXU accumulation).
    """
    N, n_h = h1.shape
    h_dtype = jnp.dtype(h1.dtype)
    itemsize = h_dtype.itemsize

    # Hoisted out of the per-tile loop: u_k = W @ c_k (two tiny matvecs), kept f32.
    W = weight.reshape(n_h, n_h).astype(jnp.float32)
    u1 = jnp.dot(W, c1.astype(jnp.float32), precision=lax.Precision.HIGHEST)
    u2 = jnp.dot(W, c2.astype(jnp.float32), precision=lax.Precision.HIGHEST)
    u = jnp.stack([u1, u2], axis=1)                          # (n_h, 2), f32
    b = bias.reshape(1).astype(jnp.float32)

    if tile_n is None:
        tile_n = _pick_tile_n(N, n_h, itemsize)
    assert tile_n % 8 == 0, "tile_n must be a multiple of 8 (sublane)"

    # Pad N up to a multiple of tile_n (costs at most one extra tile of DMA);
    # padded rows are sliced off the output below.  Works for any N.
    n_pad = _round_up(N, tile_n)
    if n_pad != N:
        pad_cfg = ((0, n_pad - N), (0, 0))
        h1, h2, h3, h4 = [jnp.pad(h, pad_cfg) for h in (h1, h2, h3, h4)]
    grid = (n_pad // tile_n,)

    # Explicit VMEM budget: 4 double-buffered h inputs + double-buffered out + u,
    # plus slack.  Stays <= 48 MiB so it fits v7x's 64 MiB per-TC VMEM.
    vmem_need = (8 * tile_n * n_h * itemsize        # 4 h inputs, 2 buffers each
                 + 2 * tile_n * 4 * 4               # (tile_n, 4) f32 out, 2 buffers
                 + 2 * n_h * 4                      # resident u
                 + (2 << 20))                       # slack
    vmem_limit = int(min(max(vmem_need, 16 << 20), 48 << 20))

    cost = pl.CostEstimate(
        flops=8 * n_pad * n_h,
        transcendentals=0,
        bytes_accessed=(4 * n_pad * n_h * itemsize  # h1..h4 reads
                        + 2 * n_h * 4               # u
                        + 4 * n_pad * 4 + 4),       # out + bias
    )

    def build(dim_sem):
        return pl.pallas_call(
            _discriminator_kernel,
            out_shape=jax.ShapeDtypeStruct((n_pad, 4), jnp.float32),
            grid_spec=pltpu.PrefetchScalarGridSpec(
                num_scalar_prefetch=0,
                grid=grid,
                in_specs=[
                    pl.BlockSpec((n_h, 2), lambda i: (0, 0)),            # u (resident)
                    pl.BlockSpec(memory_space=pltpu.MemorySpace.SMEM),   # bias scalar
                    pl.BlockSpec((tile_n, n_h), lambda i: (i, 0)),       # h1 tile
                    pl.BlockSpec((tile_n, n_h), lambda i: (i, 0)),       # h2 tile
                    pl.BlockSpec((tile_n, n_h), lambda i: (i, 0)),       # h3 tile
                    pl.BlockSpec((tile_n, n_h), lambda i: (i, 0)),       # h4 tile
                ],
                out_specs=pl.BlockSpec((tile_n, 4), lambda i: (i, 0)),
            ),
            compiler_params=pltpu.CompilerParams(
                dimension_semantics=dim_sem,
                vmem_limit_bytes=vmem_limit,
            ),
            cost_estimate=cost,
        )

    out = None
    err = None
    for sem in _dimension_semantics_options():
        try:
            out = build(sem)(u, b, h1, h2, h3, h4)
            break
        except Exception as e:       # e.g. pltpu.LoweringException -> safe fallback
            err = e
    if out is None:
        raise err

    # Columns of `out` are [sc_1, sc_2, sc_3, sc_4]; torch.cat((sc_1..sc_4), 0)
    # == transpose + row-major flatten (one trivial XLA op on a tiny array).
    return out[:N, :].T.reshape(4 * N)


def _reference(c1, c2, h1, h2, h3, h4, weight, bias):
    """Pure-JAX reference of the exact PyTorch semantics."""
    W = weight[0].astype(jnp.float32)

    def bilinear(x, c):
        return jnp.einsum("ni,ij,j->n", x.astype(jnp.float32), W,
                          c.astype(jnp.float32),
                          precision=lax.Precision.HIGHEST) + bias[0]

    return jnp.concatenate(
        [bilinear(h2, c1), bilinear(h1, c2), bilinear(h4, c1), bilinear(h3, c2)],
        axis=0)


if __name__ == "__main__":
    def make_inputs(key, N, n_h, dtype=jnp.float32):
        ks = jax.random.split(key, 7)
        c1 = jax.random.normal(ks[0], (n_h,), jnp.float32)
        c2 = jax.random.normal(ks[1], (n_h,), jnp.float32)
        hs = [jax.random.normal(k, (N, n_h), jnp.float32).astype(dtype)
              for k in ks[2:6]]
        # xavier_uniform_ for nn.Bilinear weight (1, n_h, n_h); bias zero-filled.
        fan_in, fan_out = n_h * n_h, 1 * n_h
        bound = (6.0 / (fan_in + fan_out)) ** 0.5
        weight = jax.random.uniform(ks[6], (1, n_h, n_h), jnp.float32, -bound, bound)
        bias = jnp.zeros((1,), jnp.float32)
        return (c1, c2, hs[0], hs[1], hs[2], hs[3], weight, bias)

    ok = True

    # Case 1: tiny N (padded 16 -> 128), single tile, auto tile size.
    args = make_inputs(jax.random.PRNGKey(0), N=16, n_h=32)
    logits = discriminator_forward(*args)
    jax.block_until_ready(logits)
    ref = _reference(*args)
    ok &= (logits.shape == (4 * 16,))
    ok &= bool(jnp.allclose(logits, ref, atol=1e-4, rtol=1e-4))

    # Case 2: N not a multiple of the tile -> exercises wrapper padding + 2-step grid.
    args2 = make_inputs(jax.random.PRNGKey(0), N=200, n_h=32)
    logits2 = discriminator_forward(*args2, tile_n=128)
    jax.block_until_ready(logits2)
    ref2 = _reference(*args2)
    ok &= (logits2.shape == (4 * 200,))
    ok &= bool(jnp.allclose(logits2, ref2, atol=1e-4, rtol=1e-4))

    # Case 3: bf16 embeddings (u stays f32, f32 accumulation in-kernel).
    args3 = make_inputs(jax.random.PRNGKey(0), N=256, n_h=64, dtype=jnp.bfloat16)
    logits3 = discriminator_forward(*args3, tile_n=128)
    jax.block_until_ready(logits3)
    ref3 = _reference(*args3)
    ok &= (logits3.shape == (4 * 256,))
    ok &= bool(jnp.allclose(logits3, ref3, atol=1e-3, rtol=1e-3))

    assert ok, "Pallas Discriminator kernel mismatch"
    print("KERNEL_OK")
</pallas_src>

<mosaic_0001>
module attributes {stable_mosaic.version = 11 : i64} {
  func.func @_discriminator_kernel(%arg0: i32, %arg1: memref<32x2xf32, #tpu.memory_space<vmem>>, %arg2: memref<1xf32, #tpu.memory_space<smem>>, %arg3: memref<128x32xf32, #tpu.memory_space<vmem>>, %arg4: memref<128x32xf32, #tpu.memory_space<vmem>>, %arg5: memref<128x32xf32, #tpu.memory_space<vmem>>, %arg6: memref<128x32xf32, #tpu.memory_space<vmem>>, %arg7: memref<128x4xf32, #tpu.memory_space<vmem>>) attributes {dimension_semantics = [#tpu.dimension_semantics<parallel>], iteration_bounds = array<i64: 1>, scalar_prefetch = 0 : i64, scratch_operands = 0 : i64, tpu.core_type = #tpu.core_type<tc>, window_params = [{pipeline_mode = #tpu.pipeline_mode<synchronous>, transform_indices = @transform_0, window_bounds = array<i64: 32, 2>}, {transform_indices = @transform_1, window_bounds = array<i64: 1>}, {transform_indices = @transform_2, window_bounds = array<i64: 128, 32>}, {transform_indices = @transform_3, window_bounds = array<i64: 128, 32>}, {transform_indices = @transform_4, window_bounds = array<i64: 128, 32>}, {transform_indices = @transform_5, window_bounds = array<i64: 128, 32>}, {transform_indices = @transform_6, window_bounds = array<i64: 128, 4>}]} {
    %c0 = arith.constant 0 : index
    %0 = memref.load %arg2[%c0] : memref<1xf32, #tpu.memory_space<smem>>
    %c0_0 = arith.constant 0 : index
    %c0_1 = arith.constant 0 : index
    %1 = vector.load %arg1[%c0_0, %c0_1] : memref<32x2xf32, #tpu.memory_space<vmem>>, vector<32x1xf32>
    %c0_2 = arith.constant 0 : index
    %c1 = arith.constant 1 : index
    %2 = vector.load %arg1[%c0_2, %c1] : memref<32x2xf32, #tpu.memory_space<vmem>>, vector<32x1xf32>
    %c0_3 = arith.constant 0 : index
    %c0_4 = arith.constant 0 : index
    %3 = vector.load %arg4[%c0_3, %c0_4] : memref<128x32xf32, #tpu.memory_space<vmem>>, vector<128x32xf32>
    %cst = arith.constant dense<0.000000e+00> : vector<128x1xf32>
    %4 = tpu.matmul %3, %1, %cst {dimension_numbers = #tpu.dot_dimension_numbers<[1], [0], [0], [1], [0, 0, 1, 1], [], []>, precision = #tpu.contract_precision<fp32>} : vector<128x32xf32>, vector<32x1xf32>, vector<128x1xf32> -> vector<128x1xf32>
    %c0_5 = arith.constant 0 : index
    %c0_6 = arith.constant 0 : index
    %5 = vector.load %arg3[%c0_5, %c0_6] : memref<128x32xf32, #tpu.memory_space<vmem>>, vector<128x32xf32>
    %cst_7 = arith.constant dense<0.000000e+00> : vector<128x1xf32>
    %6 = tpu.matmul %5, %2, %cst_7 {dimension_numbers = #tpu.dot_dimension_numbers<[1], [0], [0], [1], [0, 0, 1, 1], [], []>, precision = #tpu.contract_precision<fp32>} : vector<128x32xf32>, vector<32x1xf32>, vector<128x1xf32> -> vector<128x1xf32>
    %c0_8 = arith.constant 0 : index
    %c0_9 = arith.constant 0 : index
    %7 = vector.load %arg6[%c0_8, %c0_9] : memref<128x32xf32, #tpu.memory_space<vmem>>, vector<128x32xf32>
    %cst_10 = arith.constant dense<0.000000e+00> : vector<128x1xf32>
    %8 = tpu.matmul %7, %1, %cst_10 {dimension_numbers = #tpu.dot_dimension_numbers<[1], [0], [0], [1], [0, 0, 1, 1], [], []>, precision = #tpu.contract_precision<fp32>} : vector<128x32xf32>, vector<32x1xf32>, vector<128x1xf32> -> vector<128x1xf32>
    %c0_11 = arith.constant 0 : index
    %c0_12 = arith.constant 0 : index
    %9 = vector.load %arg5[%c0_11, %c0_12] : memref<128x32xf32, #tpu.memory_space<vmem>>, vector<128x32xf32>
    %cst_13 = arith.constant dense<0.000000e+00> : vector<128x1xf32>
    %10 = tpu.matmul %9, %2, %cst_13 {dimension_numbers = #tpu.dot_dimension_numbers<[1], [0], [0], [1], [0, 0, 1, 1], [], []>, precision = #tpu.contract_precision<fp32>} : vector<128x32xf32>, vector<32x1xf32>, vector<128x1xf32> -> vector<128x1xf32>
    %11 = tpu.concatenate %4, %6, %8, %10 in 1 : vector<128x1xf32>, vector<128x1xf32>, vector<128x1xf32>, vector<128x1xf32> -> vector<128x4xf32>
    %12 = vector.broadcast %0 : f32 to vector<128x4xf32>
    %13 = arith.addf %11, %12 : vector<128x4xf32>
    %c0_14 = arith.constant 0 : index
    %c0_15 = arith.constant 0 : index
    %14 = vector.load %arg7[%c0_14, %c0_15] : memref<128x4xf32, #tpu.memory_space<vmem>>, vector<128x4xf32>
    tpu.vector_store %arg7[%c0_14, %c0_15], %13 {strides = array<i32>} : memref<128x4xf32, #tpu.memory_space<vmem>>, vector<128x4xf32>,
    return
  }
  func.func @transform_0(%arg0: i32) -> (i32, i32) {
    %c0_i32 = arith.constant 0 : i32
    %c0_i32_0 = arith.constant 0 : i32
    %c0_i32_1 = arith.constant 0 : i32
    return %c0_i32, %c0_i32_0 : i32, i32
  }
  func.func @transform_1(%arg0: i32) -> i32 {
    %c0_i32 = arith.constant 0 : i32
    %c0_i32_0 = arith.constant 0 : i32
    return %c0_i32 : i32
  }
  func.func @transform_2(%arg0: i32) -> (i32, i32) {
    %c0_i32 = arith.constant 0 : i32
    %c0_i32_0 = arith.constant 0 : i32
    return %arg0, %c0_i32 : i32, i32
  }
  func.func @transform_3(%arg0: i32) -> (i32, i32) {
    %c0_i32 = arith.constant 0 : i32
    %c0_i32_0 = arith.constant 0 : i32
    return %arg0, %c0_i32 : i32, i32
  }
  func.func @transform_4(%arg0: i32) -> (i32, i32) {
    %c0_i32 = arith.constant 0 : i32
    %c0_i32_0 = arith.constant 0 : i32
    return %arg0, %c0_i32 : i32, i32
  }
  func.func @transform_5(%arg0: i32) -> (i32, i32) {
    %c0_i32 = arith.constant 0 : i32
    %c0_i32_0 = arith.constant 0 : i32
    return %arg0, %c0_i32 : i32, i32
  }
  func.func @transform_6(%arg0: i32) -> (i32, i32) {
    %c0_i32 = arith.constant 0 : i32
    %c0_i32_0 = arith.constant 0 : i32
    return %arg0, %c0_i32 : i32, i32
  }
}

</mosaic_0001>

<llo_original>
// kernel: tpu_custom_call.1
$region0: #{tpu_custom_call.1}
  #allocation0 [shape = 'u32[]', space=smem, size = 0x4, offset = 0x4, fixed_abs, tag = 'smem constant byte address 0x4 - core index']
  #allocation1 [shape = 'u32[72,128]{1,0:T(1,128)}', space=vmem, size = 0x9000, scoped, tag = 'internal scratch']
  #allocation2 [shape = 'f32[1]{0:T(128)S(6)}', space=smem, size = 0x200, scoped, tag = 'scoped memory for tpu_custom_call.1']
  %s0 = inlined_call_operand.vmem [shape: f32[32,2], index: 0, kind: input, shape index: {}]
  %s1 = inlined_call_operand.<no memory space> [shape: f32[1], index: 1, kind: input, shape index: {}]
  %s2 = inlined_call_operand.vmem [shape: f32[128,32], index: 2, kind: input, shape index: {}]
  %s3 = inlined_call_operand.vmem [shape: f32[128,32], index: 3, kind: input, shape index: {}]
  %s4 = inlined_call_operand.vmem [shape: f32[128,32], index: 4, kind: input, shape index: {}]
  %s5 = inlined_call_operand.vmem [shape: f32[128,32], index: 5, kind: input, shape index: {}]
  %s6 = inlined_call_operand.vmem [shape: f32[128,4], index: 6, kind: output, shape index: {}]
  %s7 = sld [smem:[#allocation0]]
  $region34: #{tpu_custom_call.1} parent=0
    _
  %s9 = ssub.s32 1, %s7
  %s10 = scalar_select 0, %s9, %s7
  %11 = sst [smem:[#allocation2]] %s1
  // Predicated region
  $region2: #{tpu_custom_call.1} parent=0 // pred_check
    _
  $region3: #{tpu_custom_call.1} parent=0 // pred_check_branch
    %13 = sbr.rel (0) target = $region5
  $region4: #{tpu_custom_call.1} parent=0 // pred_region
    _
  $region5: #{tpu_custom_call.1} parent=0 // pred_fallthru
    _
  // Predicated region
  $region6: #{tpu_custom_call.1} parent=0 // pred_check
    _
  $region7: #{tpu_custom_call.1} parent=0 // pred_check_branch
    %15 = sbr.rel (0) target = $region9
  $region8: #{tpu_custom_call.1} parent=0 // pred_region
    _
  $region9: #{tpu_custom_call.1} parent=0 // pred_fallthru
    _
  // Predicated region
  $region10: #{tpu_custom_call.1} parent=0 // pred_check
    _
  $region11: #{tpu_custom_call.1} parent=0 // pred_check_branch
    %17 = sbr.rel (0) target = $region13
  $region12: #{tpu_custom_call.1} parent=0 // pred_region
    _
  $region13: #{tpu_custom_call.1} parent=0 // pred_fallthru
    _
  // Predicated region
  $region14: #{tpu_custom_call.1} parent=0 // pred_check
    _
  $region15: #{tpu_custom_call.1} parent=0 // pred_check_branch
    %19 = sbr.rel (0) target = $region17
  $region16: #{tpu_custom_call.1} parent=0 // pred_region
    _
  $region17: #{tpu_custom_call.1} parent=0 // pred_fallthru
    _
  // Predicated region
  $region18: #{tpu_custom_call.1} parent=0 // pred_check
    _
  $region19: #{tpu_custom_call.1} parent=0 // pred_check_branch
    %21 = sbr.rel (0) target = $region21
  $region20: #{tpu_custom_call.1} parent=0 // pred_region
    _
  $region21: #{tpu_custom_call.1} parent=0 // pred_fallthru
    _
  // Predicated region
  $region22: #{tpu_custom_call.1} parent=0 // pred_check
    _
  $region23: #{tpu_custom_call.1} parent=0 // pred_check_branch
    %23 = sbr.rel (0) target = $region25
  $region24: #{tpu_custom_call.1} parent=0 // pred_region
    _
  $region25: #{tpu_custom_call.1} parent=0 // pred_fallthru
    _
  %s24 = sld [smem:[#allocation2]]
  %v25 = vld [vmem:[%s0] sm:$0xff]
  %v26 = vld [vmem:[%s0 + $0x8] sm:$0xff]
  %v27 = vld [vmem:[%s0 + $0x10] sm:$0xff]
  %v28 = vld [vmem:[%s0 + $0x18] sm:$0xff]
  %v29 = vld [vmem:[%s3] sm:$0xff]
  %v30 = vld [vmem:[%s3 + $0x8] sm:$0xff]
  %v31 = vld [vmem:[%s3 + $0x10] sm:$0xff]
  %v32 = vld [vmem:[%s3 + $0x18] sm:$0xff]
  %v33 = vld [vmem:[%s3 + $0x20] sm:$0xff]
  %v34 = vld [vmem:[%s3 + $0x28] sm:$0xff]
  %v35 = vld [vmem:[%s3 + $0x30] sm:$0xff]
  %v36 = vld [vmem:[%s3 + $0x38] sm:$0xff]
  %v37 = vld [vmem:[%s3 + $0x40] sm:$0xff]
  %v38 = vld [vmem:[%s3 + $0x48] sm:$0xff]
  %v39 = vld [vmem:[%s3 + $0x50] sm:$0xff]
  %v40 = vld [vmem:[%s3 + $0x58] sm:$0xff]
  %v41 = vld [vmem:[%s3 + $0x60] sm:$0xff]
  %v42 = vld [vmem:[%s3 + $0x68] sm:$0xff]
  %v43 = vld [vmem:[%s3 + $0x70] sm:$0xff]
  %v44 = vld [vmem:[%s3 + $0x78] sm:$0xff]
  %vm45 = vcmask 261120
  %v47 = vsel %vm45, %v29, 0
  %v50 = vsel %vm45, %v30, 0
  %v53 = vsel %vm45, %v31, 0
  %v56 = vsel %vm45, %v32, 0
  %v59 = vsel %vm45, %v33, 0
  %v62 = vsel %vm45, %v34, 0
  %v65 = vsel %vm45, %v35, 0
  %v68 = vsel %vm45, %v36, 0
  %v71 = vsel %vm45, %v37, 0
  %v74 = vsel %vm45, %v38, 0
  %v77 = vsel %vm45, %v39, 0
  %v80 = vsel %vm45, %v40, 0
  %v83 = vsel %vm45, %v41, 0
  %v86 = vsel %vm45, %v42, 0
  %v89 = vsel %vm45, %v43, 0
  %v92 = vsel %vm45, %v44, 0
  %94 = vmatpush.msra.mxu0 0.0
  %95 = vmatpush.msra.mxu0 0.0
  %96 = vmatpush.msra.mxu0 0.0
  %97 = vmatpush.msra.mxu0 0.0
  %98 = vmatpush.msra.mxu0 0.0
  %99 = vmatpush.msra.mxu0 0.0
  %100 = vmatpush.msra.mxu0 0.0
  %101 = vmatpush.msra.mxu0 0.0
  %102 = vmatpush.msra.mxu0 0.0
  %103 = vmatpush.msra.mxu0 0.0
  %104 = vmatpush.msra.mxu0 0.0
  %105 = vmatpush.msra.mxu0 0.0
  %v106 = vand.u32 %v28, 4294901760
  %107 = vmatpush.msra.mxu0 %v106
  %v108 = vand.u32 %v27, 4294901760
  %109 = vmatpush.msra.mxu0 %v108
  %v110 = vand.u32 %v26, 4294901760
  %111 = vmatpush.msra.mxu0 %v110
  %v112 = vand.u32 %v25, 4294901760
  %113 = vmatpush.msra.mxu0 %v112
  %v114 = vand.u32 %v47, 4294901760
  %v115 = vsub.f32 %v47, %v114
  %v116 = vand.u32 %v115, 4294901760
  %v117 = vsub.f32 %v115, %v116
  %v118 = vand.u32 %v117, 4294901760
  %119 = vmatmul.f32.gmra.mxu0 %v118
  %v120 = vpop.f32.mrf.mxu0
  %v121 = vadd.f32 0.0, %v120
  %v122 = vand.u32 %v50, 4294901760
  %v123 = vsub.f32 %v50, %v122
  %v124 = vand.u32 %v123, 4294901760
  %v125 = vsub.f32 %v123, %v124
  %v126 = vand.u32 %v125, 4294901760
  %127 = vmatmul.f32.gmra.mxu0 %v126
  %v128 = vpop.f32.mrf.mxu0
  %v129 = vadd.f32 0.0, %v128
  %v130 = vand.u32 %v53, 4294901760
  %v131 = vsub.f32 %v53, %v130
  %v132 = vand.u32 %v131, 4294901760
  %v133 = vsub.f32 %v131, %v132
  %v134 = vand.u32 %v133, 4294901760
  %135 = vmatmul.f32.gmra.mxu0 %v134
  %v136 = vpop.f32.mrf.mxu0
  %v137 = vadd.f32 0.0, %v136
  %v138 = vand.u32 %v56, 4294901760
  %v139 = vsub.f32 %v56, %v138
  %v140 = vand.u32 %v139, 4294901760
  %v141 = vsub.f32 %v139, %v140
  %v142 = vand.u32 %v141, 4294901760
  %143 = vmatmul.f32.gmra.mxu0 %v142
  %v144 = vpop.f32.mrf.mxu0
  %v145 = vadd.f32 0.0, %v144
  %v146 = vand.u32 %v59, 4294901760
  %v147 = vsub.f32 %v59, %v146
  %v148 = vand.u32 %v147, 4294901760
  %v149 = vsub.f32 %v147, %v148
  %v150 = vand.u32 %v149, 4294901760
  %151 = vmatmul.f32.gmra.mxu0 %v150
  %v152 = vpop.f32.mrf.mxu0
  %v153 = vadd.f32 0.0, %v152
  %v154 = vand.u32 %v62, 4294901760
  %v155 = vsub.f32 %v62, %v154
  %v156 = vand.u32 %v155, 4294901760
  %v157 = vsub.f32 %v155, %v156
  %v158 = vand.u32 %v157, 4294901760
  %159 = vmatmul.f32.gmra.mxu0 %v158
  %v160 = vpop.f32.mrf.mxu0
  %v161 = vadd.f32 0.0, %v160
  %v162 = vand.u32 %v65, 4294901760
  %v163 = vsub.f32 %v65, %v162
  %v164 = vand.u32 %v163, 4294901760
  %v165 = vsub.f32 %v163, %v164
  %v166 = vand.u32 %v165, 4294901760
  %167 = vmatmul.f32.gmra.mxu0 %v166
  %v168 = vpop.f32.mrf.mxu0
  %v169 = vadd.f32 0.0, %v168
  %v170 = vand.u32 %v68, 4294901760
  %v171 = vsub.f32 %v68, %v170
  %v172 = vand.u32 %v171, 4294901760
  %v173 = vsub.f32 %v171, %v172
  %v174 = vand.u32 %v173, 4294901760
  %175 = vmatmul.f32.gmra.mxu0 %v174
  %v176 = vpop.f32.mrf.mxu0
  %v177 = vadd.f32 0.0, %v176
  %v178 = vand.u32 %v71, 4294901760
  %v179 = vsub.f32 %v71, %v178
  %v180 = vand.u32 %v179, 4294901760
  %v181 = vsub.f32 %v179, %v180
  %v182 = vand.u32 %v181, 4294901760
  %183 = vmatmul.f32.gmra.mxu0 %v182
  %v184 = vpop.f32.mrf.mxu0
  %v185 = vadd.f32 0.0, %v184
  %v186 = vand.u32 %v74, 4294901760
  %v187 = vsub.f32 %v74, %v186
  %v188 = vand.u32 %v187, 4294901760
  %v189 = vsub.f32 %v187, %v188
  %v190 = vand.u32 %v189, 4294901760
  %191 = vmatmul.f32.gmra.mxu0 %v190
  %v192 = vpop.f32.mrf.mxu0
  %v193 = vadd.f32 0.0, %v192
  %v194 = vand.u32 %v77, 4294901760
  %v195 = vsub.f32 %v77, %v194
  %v196 = vand.u32 %v195, 4294901760
  %v197 = vsub.f32 %v195, %v196
  %v198 = vand.u32 %v197, 4294901760
  %199 = vmatmul.f32.gmra.mxu0 %v198
  %v200 = vpop.f32.mrf.mxu0
  %v201 = vadd.f32 0.0, %v200
  %v202 = vand.u32 %v80, 4294901760
  %v203 = vsub.f32 %v80, %v202
  %v204 = vand.u32 %v203, 4294901760
  %v205 = vsub.f32 %v203, %v204
  %v206 = vand.u32 %v205, 4294901760
  %207 = vmatmul.f32.gmra.mxu0 %v206
  %v208 = vpop.f32.mrf.mxu0
  %v209 = vadd.f32 0.0, %v208
  %v210 = vand.u32 %v83, 4294901760
  %v211 = vsub.f32 %v83, %v210
  %v212 = vand.u32 %v211, 4294901760
  %v213 = vsub.f32 %v211, %v212
  %v214 = vand.u32 %v213, 4294901760
  %215 = vmatmul.f32.gmra.mxu0 %v214
  %v216 = vpop.f32.mrf.mxu0
  %v217 = vadd.f32 0.0, %v216
  %v218 = vand.u32 %v86, 4294901760
  %v219 = vsub.f32 %v86, %v218
  %v220 = vand.u32 %v219, 4294901760
  %v221 = vsub.f32 %v219, %v220
  %v222 = vand.u32 %v221, 4294901760
  %223 = vmatmul.f32.gmra.mxu0 %v222
  %v224 = vpop.f32.mrf.mxu0
  %v225 = vadd.f32 0.0, %v224
  %v226 = vand.u32 %v89, 4294901760
  %v227 = vsub.f32 %v89, %v226
  %v228 = vand.u32 %v227, 4294901760
  %v229 = vsub.f32 %v227, %v228
  %v230 = vand.u32 %v229, 4294901760
  %231 = vmatmul.f32.gmra.mxu0 %v230
  %v232 = vpop.f32.mrf.mxu0
  %v233 = vadd.f32 0.0, %v232
  %v234 = vand.u32 %v92, 4294901760
  %v235 = vsub.f32 %v92, %v234
  %v236 = vand.u32 %v235, 4294901760
  %v237 = vsub.f32 %v235, %v236
  %v238 = vand.u32 %v237, 4294901760
  %239 = vmatmul.f32.gmra.mxu0 %v238
  %v240 = vpop.f32.mrf.mxu0
  %v241 = vadd.f32 0.0, %v240
  %242 = vdwg.mxu0
  %243 = vmatpush.msra.mxu0 0.0
  %244 = vmatpush.msra.mxu0 0.0
  %245 = vmatpush.msra.mxu0 0.0
  %246 = vmatpush.msra.mxu0 0.0
  %247 = vmatpush.msra.mxu0 0.0
  %248 = vmatpush.msra.mxu0 0.0
  %249 = vmatpush.msra.mxu0 0.0
  %250 = vmatpush.msra.mxu0 0.0
  %251 = vmatpush.msra.mxu0 0.0
  %252 = vmatpush.msra.mxu0 0.0
  %253 = vmatpush.msra.mxu0 0.0
  %254 = vmatpush.msra.mxu0 0.0
  %v255 = vand.u32 %v28, 4294901760
  %v256 = vsub.f32 %v28, %v255
  %v257 = vand.u32 %v256, 4294901760
  %v258 = vsub.f32 %v256, %v257
  %v259 = vand.u32 %v258, 4294901760
  %260 = vmatpush.msra.mxu0 %v259
  %v261 = vand.u32 %v27, 4294901760
  %v262 = vsub.f32 %v27, %v261
  %v263 = vand.u32 %v262, 4294901760
  %v264 = vsub.f32 %v262, %v263
  %v265 = vand.u32 %v264, 4294901760
  %266 = vmatpush.msra.mxu0 %v265
  %v267 = vand.u32 %v26, 4294901760
  %v268 = vsub.f32 %v26, %v267
  %v269 = vand.u32 %v268, 4294901760
  %v270 = vsub.f32 %v268, %v269
  %v271 = vand.u32 %v270, 4294901760
  %272 = vmatpush.msra.mxu0 %v271
  %v273 = vand.u32 %v25, 4294901760
  %v274 = vsub.f32 %v25, %v273
  %v275 = vand.u32 %v274, 4294901760
  %v276 = vsub.f32 %v274, %v275
  %v277 = vand.u32 %v276, 4294901760
  %278 = vmatpush.msra.mxu0 %v277
  %v279 = vand.u32 %v47, 4294901760
  %280 = vmatmul.f32.gmra.mxu0 %v279
  %v281 = vpop.f32.mrf.mxu0
  %v282 = vadd.f32 %v121, %v281
  %v283 = vand.u32 %v50, 4294901760
  %284 = vmatmul.f32.gmra.mxu0 %v283
  %v285 = vpop.f32.mrf.mxu0
  %v286 = vadd.f32 %v129, %v285
  %v287 = vand.u32 %v53, 4294901760
  %288 = vmatmul.f32.gmra.mxu0 %v287
  %v289 = vpop.f32.mrf.mxu0
  %v290 = vadd.f32 %v137, %v289
  %v291 = vand.u32 %v56, 4294901760
  %292 = vmatmul.f32.gmra.mxu0 %v291
  %v293 = vpop.f32.mrf.mxu0
  %v294 = vadd.f32 %v145, %v293
  %v295 = vand.u32 %v59, 4294901760
  %296 = vmatmul.f32.gmra.mxu0 %v295
  %v297 = vpop.f32.mrf.mxu0
  %v298 = vadd.f32 %v153, %v297
  %v299 = vand.u32 %v62, 4294901760
  %300 = vmatmul.f32.gmra.mxu0 %v299
  %v301 = vpop.f32.mrf.mxu0
  %v302 = vadd.f32 %v161, %v301
  %v303 = vand.u32 %v65, 4294901760
  %304 = vmatmul.f32.gmra.mxu0 %v303
  %v305 = vpop.f32.mrf.mxu0
  %v306 = vadd.f32 %v169, %v305
  %v307 = vand.u32 %v68, 4294901760
  %308 = vmatmul.f32.gmra.mxu0 %v307
  %v309 = vpop.f32.mrf.mxu0
  %v310 = vadd.f32 %v177, %v309
  %v311 = vand.u32 %v71, 4294901760
  %312 = vmatmul.f32.gmra.mxu0 %v311
  %v313 = vpop.f32.mrf.mxu0
  %v314 = vadd.f32 %v185, %v313
  %v315 = vand.u32 %v74, 4294901760
  %316 = vmatmul.f32.gmra.mxu0 %v315
  %v317 = vpop.f32.mrf.mxu0
  %v318 = vadd.f32 %v193, %v317
  %v319 = vand.u32 %v77, 4294901760
  %320 = vmatmul.f32.gmra.mxu0 %v319
  %v321 = vpop.f32.mrf.mxu0
  %v322 = vadd.f32 %v201, %v321
  %v323 = vand.u32 %v80, 4294901760
  %324 = vmatmul.f32.gmra.mxu0 %v323
  %v325 = vpop.f32.mrf.mxu0
  %v326 = vadd.f32 %v209, %v325
  %v327 = vand.u32 %v83, 4294901760
  %328 = vmatmul.f32.gmra.mxu0 %v327
  %v329 = vpop.f32.mrf.mxu0
  %v330 = vadd.f32 %v217, %v329
  %v331 = vand.u32 %v86, 4294901760
  %332 = vmatmul.f32.gmra.mxu0 %v331
  %v333 = vpop.f32.mrf.mxu0
  %v334 = vadd.f32 %v225, %v333
  %v335 = vand.u32 %v89, 4294901760
  %336 = vmatmul.f32.gmra.mxu0 %v335
  %v337 = vpop.f32.mrf.mxu0
  %v338 = vadd.f32 %v233, %v337
  %v339 = vand.u32 %v92, 4294901760
  %340 = vmatmul.f32.gmra.mxu0 %v339
  %v341 = vpop.f32.mrf.mxu0
  %v342 = vadd.f32 %v241, %v341
  %343 = vdwg.mxu0
  %344 = vmatpush.msra.mxu0 0.0
  %345 = vmatpush.msra.mxu0 0.0
  %346 = vmatpush.msra.mxu0 0.0
  %347 = vmatpush.msra.mxu0 0.0
  %348 = vmatpush.msra.mxu0 0.0
  %349 = vmatpush.msra.mxu0 0.0
  %350 = vmatpush.msra.mxu0 0.0
  %351 = vmatpush.msra.mxu0 0.0
  %352 = vmatpush.msra.mxu0 0.0
  %353 = vmatpush.msra.mxu0 0.0
  %354 = vmatpush.msra.mxu0 0.0
  %355 = vmatpush.msra.mxu0 0.0
  %v356 = vand.u32 %v28, 4294901760
  %v357 = vsub.f32 %v28, %v356
  %358 = vmatpush.msra.mxu0 %v357
  %v359 = vand.u32 %v27, 4294901760
  %v360 = vsub.f32 %v27, %v359
  %361 = vmatpush.msra.mxu0 %v360
  %v362 = vand.u32 %v26, 4294901760
  %v363 = vsub.f32 %v26, %v362
  %364 = vmatpush.msra.mxu0 %v363
  %v365 = vand.u32 %v25, 4294901760
  %v366 = vsub.f32 %v25, %v365
  %367 = vmatpush.msra.mxu0 %v366
  %v368 = vand.u32 %v47, 4294901760
  %v369 = vsub.f32 %v47, %v368
  %370 = vmatmul.f32.gmra.mxu0 %v369
  %v371 = vpop.f32.mrf.mxu0
  %v372 = vadd.f32 %v282, %v371
  %v373 = vand.u32 %v50, 4294901760
  %v374 = vsub.f32 %v50, %v373
  %375 = vmatmul.f32.gmra.mxu0 %v374
  %v376 = vpop.f32.mrf.mxu0
  %v377 = vadd.f32 %v286, %v376
  %v378 = vand.u32 %v53, 4294901760
  %v379 = vsub.f32 %v53, %v378
  %380 = vmatmul.f32.gmra.mxu0 %v379
  %v381 = vpop.f32.mrf.mxu0
  %v382 = vadd.f32 %v290, %v381
  %v383 = vand.u32 %v56, 4294901760
  %v384 = vsub.f32 %v56, %v383
  %385 = vmatmul.f32.gmra.mxu0 %v384
  %v386 = vpop.f32.mrf.mxu0
  %v387 = vadd.f32 %v294, %v386
  %v388 = vand.u32 %v59, 4294901760
  %v389 = vsub.f32 %v59, %v388
  %390 = vmatmul.f32.gmra.mxu0 %v389
  %v391 = vpop.f32.mrf.mxu0
  %v392 = vadd.f32 %v298, %v391
  %v393 = vand.u32 %v62, 4294901760
  %v394 = vsub.f32 %v62, %v393
  %395 = vmatmul.f32.gmra.mxu0 %v394
  %v396 = vpop.f32.mrf.mxu0
  %v397 = vadd.f32 %v302, %v396
  %v398 = vand.u32 %v65, 4294901760
  %v399 = vsub.f32 %v65, %v398
  %400 = vmatmul.f32.gmra.mxu0 %v399
  %v401 = vpop.f32.mrf.mxu0
  %v402 = vadd.f32 %v306, %v401
  %v403 = vand.u32 %v68, 4294901760
  %v404 = vsub.f32 %v68, %v403
  %405 = vmatmul.f32.gmra.mxu0 %v404
  %v406 = vpop.f32.mrf.mxu0
  %v407 = vadd.f32 %v310, %v406
  %v408 = vand.u32 %v71, 4294901760
  %v409 = vsub.f32 %v71, %v408
  %410 = vmatmul.f32.gmra.mxu0 %v409
  %v411 = vpop.f32.mrf.mxu0
  %v412 = vadd.f32 %v314, %v411
  %v413 = vand.u32 %v74, 4294901760
  %v414 = vsub.f32 %v74, %v413
  %415 = vmatmul.f32.gmra.mxu0 %v414
  %v416 = vpop.f32.mrf.mxu0
  %v417 = vadd.f32 %v318, %v416
  %v418 = vand.u32 %v77, 4294901760
  %v419 = vsub.f32 %v77, %v418
  %420 = vmatmul.f32.gmra.mxu0 %v419
  %v421 = vpop.f32.mrf.mxu0
  %v422 = vadd.f32 %v322, %v421
  %v423 = vand.u32 %v80, 4294901760
  %v424 = vsub.f32 %v80, %v423
  %425 = vmatmul.f32.gmra.mxu0 %v424
  %v426 = vpop.f32.mrf.mxu0
  %v427 = vadd.f32 %v326, %v426
  %v428 = vand.u32 %v83, 4294901760
  %v429 = vsub.f32 %v83, %v428
  %430 = vmatmul.f32.gmra.mxu0 %v429
  %v431 = vpop.f32.mrf.mxu0
  %v432 = vadd.f32 %v330, %v431
  %v433 = vand.u32 %v86, 4294901760
  %v434 = vsub.f32 %v86, %v433
  %435 = vmatmul.f32.gmra.mxu0 %v434
  %v436 = vpop.f32.mrf.mxu0
  %v437 = vadd.f32 %v334, %v436
  %v438 = vand.u32 %v89, 4294901760
  %v439 = vsub.f32 %v89, %v438
  %440 = vmatmul.f32.gmra.mxu0 %v439
  %v441 = vpop.f32.mrf.mxu0
  %v442 = vadd.f32 %v338, %v441
  %v443 = vand.u32 %v92, 4294901760
  %v444 = vsub.f32 %v92, %v443
  %445 = vmatmul.f32.gmra.mxu0 %v444
  %v446 = vpop.f32.mrf.mxu0
  %v447 = vadd.f32 %v342, %v446
  %448 = vdwg.mxu0
  %449 = vmatpush.msra.mxu0 0.0
  %450 = vmatpush.msra.mxu0 0.0
  %451 = vmatpush.msra.mxu0 0.0
  %452 = vmatpush.msra.mxu0 0.0
  %453 = vmatpush.msra.mxu0 0.0
  %454 = vmatpush.msra.mxu0 0.0
  %455 = vmatpush.msra.mxu0 0.0
  %456 = vmatpush.msra.mxu0 0.0
  %457 = vmatpush.msra.mxu0 0.0
  %458 = vmatpush.msra.mxu0 0.0
  %459 = vmatpush.msra.mxu0 0.0
  %460 = vmatpush.msra.mxu0 0.0
  %v461 = vand.u32 %v28, 4294901760
  %462 = vmatpush.msra.mxu0 %v461
  %v463 = vand.u32 %v27, 4294901760
  %464 = vmatpush.msra.mxu0 %v463
  %v465 = vand.u32 %v26, 4294901760
  %466 = vmatpush.msra.mxu0 %v465
  %v467 = vand.u32 %v25, 4294901760
  %468 = vmatpush.msra.mxu0 %v467
  %v469 = vand.u32 %v47, 4294901760
  %v470 = vsub.f32 %v47, %v469
  %v471 = vand.u32 %v470, 4294901760
  %472 = vmatmul.f32.gmra.mxu0 %v471
  %v473 = vpop.f32.mrf.mxu0
  %v474 = vadd.f32 %v372, %v473
  %v475 = vand.u32 %v50, 4294901760
  %v476 = vsub.f32 %v50, %v475
  %v477 = vand.u32 %v476, 4294901760
  %478 = vmatmul.f32.gmra.mxu0 %v477
  %v479 = vpop.f32.mrf.mxu0
  %v480 = vadd.f32 %v377, %v479
  %v481 = vand.u32 %v53, 4294901760
  %v482 = vsub.f32 %v53, %v481
  %v483 = vand.u32 %v482, 4294901760
  %484 = vmatmul.f32.gmra.mxu0 %v483
  %v485 = vpop.f32.mrf.mxu0
  %v486 = vadd.f32 %v382, %v485
  %v487 = vand.u32 %v56, 4294901760
  %v488 = vsub.f32 %v56, %v487
  %v489 = vand.u32 %v488, 4294901760
  %490 = vmatmul.f32.gmra.mxu0 %v489
  %v491 = vpop.f32.mrf.mxu0
  %v492 = vadd.f32 %v387, %v491
  %v493 = vand.u32 %v59, 4294901760
  %v494 = vsub.f32 %v59, %v493
  %v495 = vand.u32 %v494, 4294901760
  %496 = vmatmul.f32.gmra.mxu0 %v495
  %v497 = vpop.f32.mrf.mxu0
  %v498 = vadd.f32 %v392, %v497
  %v499 = vand.u32 %v62, 4294901760
  %v500 = vsub.f32 %v62, %v499
  %v501 = vand.u32 %v500, 4294901760
  %502 = vmatmul.f32.gmra.mxu0 %v501
  %v503 = vpop.f32.mrf.mxu0
  %v504 = vadd.f32 %v397, %v503
  %v505 = vand.u32 %v65, 4294901760
  %v506 = vsub.f32 %v65, %v505
  %v507 = vand.u32 %v506, 4294901760
  %508 = vmatmul.f32.gmra.mxu0 %v507
  %v509 = vpop.f32.mrf.mxu0
  %v510 = vadd.f32 %v402, %v509
  %v511 = vand.u32 %v68, 4294901760
  %v512 = vsub.f32 %v68, %v511
  %v513 = vand.u32 %v512, 4294901760
  %514 = vmatmul.f32.gmra.mxu0 %v513
  %v515 = vpop.f32.mrf.mxu0
  %v516 = vadd.f32 %v407, %v515
  %v517 = vand.u32 %v71, 4294901760
  %v518 = vsub.f32 %v71, %v517
  %v519 = vand.u32 %v518, 4294901760
  %520 = vmatmul.f32.gmra.mxu0 %v519
  %v521 = vpop.f32.mrf.mxu0
  %v522 = vadd.f32 %v412, %v521
  %v523 = vand.u32 %v74, 4294901760
  %v524 = vsub.f32 %v74, %v523
  %v525 = vand.u32 %v524, 4294901760
  %526 = vmatmul.f32.gmra.mxu0 %v525
  %v527 = vpop.f32.mrf.mxu0
  %v528 = vadd.f32 %v417, %v527
  %v529 = vand.u32 %v77, 4294901760
  %v530 = vsub.f32 %v77, %v529
  %v531 = vand.u32 %v530, 4294901760
  %532 = vmatmul.f32.gmra.mxu0 %v531
  %v533 = vpop.f32.mrf.mxu0
  %v534 = vadd.f32 %v422, %v533
  %v535 = vand.u32 %v80, 4294901760
  %v536 = vsub.f32 %v80, %v535
  %v537 = vand.u32 %v536, 4294901760
  %538 = vmatmul.f32.gmra.mxu0 %v537
  %v539 = vpop.f32.mrf.mxu0
  %v540 = vadd.f32 %v427, %v539
  %v541 = vand.u32 %v83, 4294901760
  %v542 = vsub.f32 %v83, %v541
  %v543 = vand.u32 %v542, 4294901760
  %544 = vmatmul.f32.gmra.mxu0 %v543
  %v545 = vpop.f32.mrf.mxu0
  %v546 = vadd.f32 %v432, %v545
  %v547 = vand.u32 %v86, 4294901760
  %v548 = vsub.f32 %v86, %v547
  %v549 = vand.u32 %v548, 4294901760
  %550 = vmatmul.f32.gmra.mxu0 %v549
  %v551 = vpop.f32.mrf.mxu0
  %v552 = vadd.f32 %v437, %v551
  %v553 = vand.u32 %v89, 4294901760
  %v554 = vsub.f32 %v89, %v553
  %v555 = vand.u32 %v554, 4294901760
  %556 = vmatmul.f32.gmra.mxu0 %v555
  %v557 = vpop.f32.mrf.mxu0
  %v558 = vadd.f32 %v442, %v557
  %v559 = vand.u32 %v92, 4294901760
  %v560 = vsub.f32 %v92, %v559
  %v561 = vand.u32 %v560, 4294901760
  %562 = vmatmul.f32.gmra.mxu0 %v561
  %v563 = vpop.f32.mrf.mxu0
  %v564 = vadd.f32 %v447, %v563
  %565 = vdwg.mxu0
  %566 = vmatpush.msra.mxu0 0.0
  %567 = vmatpush.msra.mxu0 0.0
  %568 = vmatpush.msra.mxu0 0.0
  %569 = vmatpush.msra.mxu0 0.0
  %570 = vmatpush.msra.mxu0 0.0
  %571 = vmatpush.msra.mxu0 0.0
  %572 = vmatpush.msra.mxu0 0.0
  %573 = vmatpush.msra.mxu0 0.0
  %574 = vmatpush.msra.mxu0 0.0
  %575 = vmatpush.msra.mxu0 0.0
  %576 = vmatpush.msra.mxu0 0.0
  %577 = vmatpush.msra.mxu0 0.0
  %v578 = vand.u32 %v28, 4294901760
  %v579 = vsub.f32 %v28, %v578
  %v580 = vand.u32 %v579, 4294901760
  %581 = vmatpush.msra.mxu0 %v580
  %v582 = vand.u32 %v27, 4294901760
  %v583 = vsub.f32 %v27, %v582
  %v584 = vand.u32 %v583, 4294901760
  %585 = vmatpush.msra.mxu0 %v584
  %v586 = vand.u32 %v26, 4294901760
  %v587 = vsub.f32 %v26, %v586
  %v588 = vand.u32 %v587, 4294901760
  %589 = vmatpush.msra.mxu0 %v588
  %v590 = vand.u32 %v25, 4294901760
  %v591 = vsub.f32 %v25, %v590
  %v592 = vand.u32 %v591, 4294901760
  %593 = vmatpush.msra.mxu0 %v592
  %v594 = vand.u32 %v47, 4294901760
  %595 = vmatmul.f32.gmra.mxu0 %v594
  %v596 = vpop.f32.mrf.mxu0
  %v597 = vadd.f32 %v474, %v596
  %v598 = vand.u32 %v50, 4294901760
  %599 = vmatmul.f32.gmra.mxu0 %v598
  %v600 = vpop.f32.mrf.mxu0
  %v601 = vadd.f32 %v480, %v600
  %v602 = vand.u32 %v53, 4294901760
  %603 = vmatmul.f32.gmra.mxu0 %v602
  %v604 = vpop.f32.mrf.mxu0
  %v605 = vadd.f32 %v486, %v604
  %v606 = vand.u32 %v56, 4294901760
  %607 = vmatmul.f32.gmra.mxu0 %v606
  %v608 = vpop.f32.mrf.mxu0
  %v609 = vadd.f32 %v492, %v608
  %v610 = vand.u32 %v59, 4294901760
  %611 = vmatmul.f32.gmra.mxu0 %v610
  %v612 = vpop.f32.mrf.mxu0
  %v613 = vadd.f32 %v498, %v612
  %v614 = vand.u32 %v62, 4294901760
  %615 = vmatmul.f32.gmra.mxu0 %v614
  %v616 = vpop.f32.mrf.mxu0
  %v617 = vadd.f32 %v504, %v616
  %v618 = vand.u32 %v65, 4294901760
  %619 = vmatmul.f32.gmra.mxu0 %v618
  %v620 = vpop.f32.mrf.mxu0
  %v621 = vadd.f32 %v510, %v620
  %v622 = vand.u32 %v68, 4294901760
  %623 = vmatmul.f32.gmra.mxu0 %v622
  %v624 = vpop.f32.mrf.mxu0
  %v625 = vadd.f32 %v516, %v624
  %v626 = vand.u32 %v71, 4294901760
  %627 = vmatmul.f32.gmra.mxu0 %v626
  %v628 = vpop.f32.mrf.mxu0
  %v629 = vadd.f32 %v522, %v628
  %v630 = vand.u32 %v74, 4294901760
  %631 = vmatmul.f32.gmra.mxu0 %v630
  %v632 = vpop.f32.mrf.mxu0
  %v633 = vadd.f32 %v528, %v632
  %v634 = vand.u32 %v77, 4294901760
  %635 = vmatmul.f32.gmra.mxu0 %v634
  %v636 = vpop.f32.mrf.mxu0
  %v637 = vadd.f32 %v534, %v636
  %v638 = vand.u32 %v80, 4294901760
  %639 = vmatmul.f32.gmra.mxu0 %v638
  %v640 = vpop.f32.mrf.mxu0
  %v641 = vadd.f32 %v540, %v640
  %v642 = vand.u32 %v83, 4294901760
  %643 = vmatmul.f32.gmra.mxu0 %v642
  %v644 = vpop.f32.mrf.mxu0
  %v645 = vadd.f32 %v546, %v644
  %v646 = vand.u32 %v86, 4294901760
  %647 = vmatmul.f32.gmra.mxu0 %v646
  %v648 = vpop.f32.mrf.mxu0
  %v649 = vadd.f32 %v552, %v648
  %v650 = vand.u32 %v89, 4294901760
  %651 = vmatmul.f32.gmra.mxu0 %v650
  %v652 = vpop.f32.mrf.mxu0
  %v653 = vadd.f32 %v558, %v652
  %v654 = vand.u32 %v92, 4294901760
  %655 = vmatmul.f32.gmra.mxu0 %v654
  %v656 = vpop.f32.mrf.mxu0
  %v657 = vadd.f32 %v564, %v656
  %658 = vdwg.mxu0
  %659 = vmatpush.msra.mxu0 0.0
  %660 = vmatpush.msra.mxu0 0.0
  %661 = vmatpush.msra.mxu0 0.0
  %662 = vmatpush.msra.mxu0 0.0
  %663 = vmatpush.msra.mxu0 0.0
  %664 = vmatpush.msra.mxu0 0.0
  %665 = vmatpush.msra.mxu0 0.0
  %666 = vmatpush.msra.mxu0 0.0
  %667 = vmatpush.msra.mxu0 0.0
  %668 = vmatpush.msra.mxu0 0.0
  %669 = vmatpush.msra.mxu0 0.0
  %670 = vmatpush.msra.mxu0 0.0
  %v671 = vand.u32 %v28, 4294901760
  %672 = vmatpush.msra.mxu0 %v671
  %v673 = vand.u32 %v27, 4294901760
  %674 = vmatpush.msra.mxu0 %v673
  %v675 = vand.u32 %v26, 4294901760
  %676 = vmatpush.msra.mxu0 %v675
  %v677 = vand.u32 %v25, 4294901760
  %678 = vmatpush.msra.mxu0 %v677
  %v679 = vand.u32 %v47, 4294901760
  %680 = vmatmul.f32.gmra.mxu0 %v679
  %v681 = vpop.f32.mrf.mxu0
  %v682 = vadd.f32 %v597, %v681
  %v683 = vand.u32 %v50, 4294901760
  %684 = vmatmul.f32.gmra.mxu0 %v683
  %v685 = vpop.f32.mrf.mxu0
  %v686 = vadd.f32 %v601, %v685
  %v687 = vand.u32 %v53, 4294901760
  %688 = vmatmul.f32.gmra.mxu0 %v687
  %v689 = vpop.f32.mrf.mxu0
  %v690 = vadd.f32 %v605, %v689
  %v691 = vand.u32 %v56, 4294901760
  %692 = vmatmul.f32.gmra.mxu0 %v691
  %v693 = vpop.f32.mrf.mxu0
  %v694 = vadd.f32 %v609, %v693
  %v695 = vand.u32 %v59, 4294901760
  %696 = vmatmul.f32.gmra.mxu0 %v695
  %v697 = vpop.f32.mrf.mxu0
  %v698 = vadd.f32 %v613, %v697
  %v699 = vand.u32 %v62, 4294901760
  %700 = vmatmul.f32.gmra.mxu0 %v699
  %v701 = vpop.f32.mrf.mxu0
  %v702 = vadd.f32 %v617, %v701
  %v703 = vand.u32 %v65, 4294901760
  %704 = vmatmul.f32.gmra.mxu0 %v703
  %v705 = vpop.f32.mrf.mxu0
  %v706 = vadd.f32 %v621, %v705
  %v707 = vand.u32 %v68, 4294901760
  %708 = vmatmul.f32.gmra.mxu0 %v707
  %v709 = vpop.f32.mrf.mxu0
  %v710 = vadd.f32 %v625, %v709
  %v711 = vand.u32 %v71, 4294901760
  %712 = vmatmul.f32.gmra.mxu0 %v711
  %v713 = vpop.f32.mrf.mxu0
  %v714 = vadd.f32 %v629, %v713
  %v715 = vand.u32 %v74, 4294901760
  %716 = vmatmul.f32.gmra.mxu0 %v715
  %v717 = vpop.f32.mrf.mxu0
  %v718 = vadd.f32 %v633, %v717
  %v719 = vand.u32 %v77, 4294901760
  %720 = vmatmul.f32.gmra.mxu0 %v719
  %v721 = vpop.f32.mrf.mxu0
  %v722 = vadd.f32 %v637, %v721
  %v723 = vand.u32 %v80, 4294901760
  %724 = vmatmul.f32.gmra.mxu0 %v723
  %v725 = vpop.f32.mrf.mxu0
  %v726 = vadd.f32 %v641, %v725
  %v727 = vand.u32 %v83, 4294901760
  %728 = vmatmul.f32.gmra.mxu0 %v727
  %v729 = vpop.f32.mrf.mxu0
  %v730 = vadd.f32 %v645, %v729
  %v731 = vand.u32 %v86, 4294901760
  %732 = vmatmul.f32.gmra.mxu0 %v731
  %v733 = vpop.f32.mrf.mxu0
  %v734 = vadd.f32 %v649, %v733
  %v735 = vand.u32 %v89, 4294901760
  %736 = vmatmul.f32.gmra.mxu0 %v735
  %v737 = vpop.f32.mrf.mxu0
  %v738 = vadd.f32 %v653, %v737
  %v739 = vand.u32 %v92, 4294901760
  %740 = vmatmul.f32.gmra.mxu0 %v739
  %v741 = vpop.f32.mrf.mxu0
  %v742 = vadd.f32 %v657, %v741
  %743 = vdwg.mxu0
  %v744 = vld [vmem:[%s2] sm:$0xff]
  %v745 = vld [vmem:[%s2 + $0x8] sm:$0xff]
  %v746 = vld [vmem:[%s2 + $0x10] sm:$0xff]
  %v747 = vld [vmem:[%s2 + $0x18] sm:$0xff]
  %v748 = vld [vmem:[%s2 + $0x20] sm:$0xff]
  %v749 = vld [vmem:[%s2 + $0x28] sm:$0xff]
  %v750 = vld [vmem:[%s2 + $0x30] sm:$0xff]
  %v751 = vld [vmem:[%s2 + $0x38] sm:$0xff]
  %v752 = vld [vmem:[%s2 + $0x40] sm:$0xff]
  %v753 = vld [vmem:[%s2 + $0x48] sm:$0xff]
  %v754 = vld [vmem:[%s2 + $0x50] sm:$0xff]
  %v755 = vld [vmem:[%s2 + $0x58] sm:$0xff]
  %v756 = vld [vmem:[%s2 + $0x60] sm:$0xff]
  %v757 = vld [vmem:[%s2 + $0x68] sm:$0xff]
  %v758 = vld [vmem:[%s2 + $0x70] sm:$0xff]
  %v759 = vld [vmem:[%s2 + $0x78] sm:$0xff]
  %764 = vrot.lane.b32.xlu0 %v25, 127
  %v765 = vpop.permute.xlu0 %764
  %766 = vrot.lane.b32.xlu0 %v26, 127
  %v767 = vpop.permute.xlu0 %766
  %768 = vrot.lane.b32.xlu0 %v27, 127
  %v769 = vpop.permute.xlu0 %768
  %770 = vrot.lane.b32.xlu0 %v28, 127
  %v771 = vpop.permute.xlu0 %770
  %v777 = vsel %vm45, %v744, 0
  %v780 = vsel %vm45, %v745, 0
  %v783 = vsel %vm45, %v746, 0
  %v786 = vsel %vm45, %v747, 0
  %v789 = vsel %vm45, %v748, 0
  %v792 = vsel %vm45, %v749, 0
  %v795 = vsel %vm45, %v750, 0
  %v798 = vsel %vm45, %v751, 0
  %v801 = vsel %vm45, %v752, 0
  %v804 = vsel %vm45, %v753, 0
  %v807 = vsel %vm45, %v754, 0
  %v810 = vsel %vm45, %v755, 0
  %v813 = vsel %vm45, %v756, 0
  %v816 = vsel %vm45, %v757, 0
  %v819 = vsel %vm45, %v758, 0
  %v822 = vsel %vm45, %v759, 0
  %824 = vmatpush.msra.mxu0 0.0
  %825 = vmatpush.msra.mxu0 0.0
  %826 = vmatpush.msra.mxu0 0.0
  %827 = vmatpush.msra.mxu0 0.0
  %828 = vmatpush.msra.mxu0 0.0
  %829 = vmatpush.msra.mxu0 0.0
  %830 = vmatpush.msra.mxu0 0.0
  %831 = vmatpush.msra.mxu0 0.0
  %832 = vmatpush.msra.mxu0 0.0
  %833 = vmatpush.msra.mxu0 0.0
  %834 = vmatpush.msra.mxu0 0.0
  %835 = vmatpush.msra.mxu0 0.0
  %v836 = vand.u32 %v771, 4294901760
  %837 = vmatpush.msra.mxu0 %v836
  %v838 = vand.u32 %v769, 4294901760
  %839 = vmatpush.msra.mxu0 %v838
  %v840 = vand.u32 %v767, 4294901760
  %841 = vmatpush.msra.mxu0 %v840
  %v842 = vand.u32 %v765, 4294901760
  %843 = vmatpush.msra.mxu0 %v842
  %v844 = vand.u32 %v777, 4294901760
  %v845 = vsub.f32 %v777, %v844
  %v846 = vand.u32 %v845, 4294901760
  %v847 = vsub.f32 %v845, %v846
  %v848 = vand.u32 %v847, 4294901760
  %849 = vmatmul.f32.gmra.mxu0 %v848
  %v850 = vpop.f32.mrf.mxu0
  %v851 = vadd.f32 0.0, %v850
  %v852 = vand.u32 %v780, 4294901760
  %v853 = vsub.f32 %v780, %v852
  %v854 = vand.u32 %v853, 4294901760
  %v855 = vsub.f32 %v853, %v854
  %v856 = vand.u32 %v855, 4294901760
  %857 = vmatmul.f32.gmra.mxu0 %v856
  %v858 = vpop.f32.mrf.mxu0
  %v859 = vadd.f32 0.0, %v858
  %v860 = vand.u32 %v783, 4294901760
  %v861 = vsub.f32 %v783, %v860
  %v862 = vand.u32 %v861, 4294901760
  %v863 = vsub.f32 %v861, %v862
  %v864 = vand.u32 %v863, 4294901760
  %865 = vmatmul.f32.gmra.mxu0 %v864
  %v866 = vpop.f32.mrf.mxu0
  %v867 = vadd.f32 0.0, %v866
  %v868 = vand.u32 %v786, 4294901760
  %v869 = vsub.f32 %v786, %v868
  %v870 = vand.u32 %v869, 4294901760
  %v871 = vsub.f32 %v869, %v870
  %v872 = vand.u32 %v871, 4294901760
  %873 = vmatmul.f32.gmra.mxu0 %v872
  %v874 = vpop.f32.mrf.mxu0
  %v875 = vadd.f32 0.0, %v874
  %v876 = vand.u32 %v789, 4294901760
  %v877 = vsub.f32 %v789, %v876
  %v878 = vand.u32 %v877, 4294901760
  %v879 = vsub.f32 %v877, %v878
  %v880 = vand.u32 %v879, 4294901760
  %881 = vmatmul.f32.gmra.mxu0 %v880
  %v882 = vpop.f32.mrf.mxu0
  %v883 = vadd.f32 0.0, %v882
  %v884 = vand.u32 %v792, 4294901760
  %v885 = vsub.f32 %v792, %v884
  %v886 = vand.u32 %v885, 4294901760
  %v887 = vsub.f32 %v885, %v886
  %v888 = vand.u32 %v887, 4294901760
  %889 = vmatmul.f32.gmra.mxu0 %v888
  %v890 = vpop.f32.mrf.mxu0
  %v891 = vadd.f32 0.0, %v890
  %v892 = vand.u32 %v795, 4294901760
  %v893 = vsub.f32 %v795, %v892
  %v894 = vand.u32 %v893, 4294901760
  %v895 = vsub.f32 %v893, %v894
  %v896 = vand.u32 %v895, 4294901760
  %897 = vmatmul.f32.gmra.mxu0 %v896
  %v898 = vpop.f32.mrf.mxu0
  %v899 = vadd.f32 0.0, %v898
  %v900 = vand.u32 %v798, 4294901760
  %v901 = vsub.f32 %v798, %v900
  %v902 = vand.u32 %v901, 4294901760
  %v903 = vsub.f32 %v901, %v902
  %v904 = vand.u32 %v903, 4294901760
  %905 = vmatmul.f32.gmra.mxu0 %v904
  %v906 = vpop.f32.mrf.mxu0
  %v907 = vadd.f32 0.0, %v906
  %v908 = vand.u32 %v801, 4294901760
  %v909 = vsub.f32 %v801, %v908
  %v910 = vand.u32 %v909, 4294901760
  %v911 = vsub.f32 %v909, %v910
  %v912 = vand.u32 %v911, 4294901760
  %913 = vmatmul.f32.gmra.mxu0 %v912
  %v914 = vpop.f32.mrf.mxu0
  %v915 = vadd.f32 0.0, %v914
  %v916 = vand.u32 %v804, 4294901760
  %v917 = vsub.f32 %v804, %v916
  %v918 = vand.u32 %v917, 4294901760
  %v919 = vsub.f32 %v917, %v918
  %v920 = vand.u32 %v919, 4294901760
  %921 = vmatmul.f32.gmra.mxu0 %v920
  %v922 = vpop.f32.mrf.mxu0
  %v923 = vadd.f32 0.0, %v922
  %v924 = vand.u32 %v807, 4294901760
  %v925 = vsub.f32 %v807, %v924
  %v926 = vand.u32 %v925, 4294901760
  %v927 = vsub.f32 %v925, %v926
  %v928 = vand.u32 %v927, 4294901760
  %929 = vmatmul.f32.gmra.mxu0 %v928
  %v930 = vpop.f32.mrf.mxu0
  %v931 = vadd.f32 0.0, %v930
  %v932 = vand.u32 %v810, 4294901760
  %v933 = vsub.f32 %v810, %v932
  %v934 = vand.u32 %v933, 4294901760
  %v935 = vsub.f32 %v933, %v934
  %v936 = vand.u32 %v935, 4294901760
  %937 = vmatmul.f32.gmra.mxu0 %v936
  %v938 = vpop.f32.mrf.mxu0
  %v939 = vadd.f32 0.0, %v938
  %v940 = vand.u32 %v813, 4294901760
  %v941 = vsub.f32 %v813, %v940
  %v942 = vand.u32 %v941, 4294901760
  %v943 = vsub.f32 %v941, %v942
  %v944 = vand.u32 %v943, 4294901760
  %945 = vmatmul.f32.gmra.mxu0 %v944
  %v946 = vpop.f32.mrf.mxu0
  %v947 = vadd.f32 0.0, %v946
  %v948 = vand.u32 %v816, 4294901760
  %v949 = vsub.f32 %v816, %v948
  %v950 = vand.u32 %v949, 4294901760
  %v951 = vsub.f32 %v949, %v950
  %v952 = vand.u32 %v951, 4294901760
  %953 = vmatmul.f32.gmra.mxu0 %v952
  %v954 = vpop.f32.mrf.mxu0
  %v955 = vadd.f32 0.0, %v954
  %v956 = vand.u32 %v819, 4294901760
  %v957 = vsub.f32 %v819, %v956
  %v958 = vand.u32 %v957, 4294901760
  %v959 = vsub.f32 %v957, %v958
  %v960 = vand.u32 %v959, 4294901760
  %961 = vmatmul.f32.gmra.mxu0 %v960
  %v962 = vpop.f32.mrf.mxu0
  %v963 = vadd.f32 0.0, %v962
  %v964 = vand.u32 %v822, 4294901760
  %v965 = vsub.f32 %v822, %v964
  %v966 = vand.u32 %v965, 4294901760
  %v967 = vsub.f32 %v965, %v966
  %v968 = vand.u32 %v967, 4294901760
  %969 = vmatmul.f32.gmra.mxu0 %v968
  %v970 = vpop.f32.mrf.mxu0
  %v971 = vadd.f32 0.0, %v970
  %972 = vdwg.mxu0
  %973 = vmatpush.msra.mxu0 0.0
  %974 = vmatpush.msra.mxu0 0.0
  %975 = vmatpush.msra.mxu0 0.0
  %976 = vmatpush.msra.mxu0 0.0
  %977 = vmatpush.msra.mxu0 0.0
  %978 = vmatpush.msra.mxu0 0.0
  %979 = vmatpush.msra.mxu0 0.0
  %980 = vmatpush.msra.mxu0 0.0
  %981 = vmatpush.msra.mxu0 0.0
  %982 = vmatpush.msra.mxu0 0.0
  %983 = vmatpush.msra.mxu0 0.0
  %984 = vmatpush.msra.mxu0 0.0
  %v985 = vand.u32 %v771, 4294901760
  %v986 = vsub.f32 %v771, %v985
  %v987 = vand.u32 %v986, 4294901760
  %v988 = vsub.f32 %v986, %v987
  %v989 = vand.u32 %v988, 4294901760
  %990 = vmatpush.msra.mxu0 %v989
  %v991 = vand.u32 %v769, 4294901760
  %v992 = vsub.f32 %v769, %v991
  %v993 = vand.u32 %v992, 4294901760
  %v994 = vsub.f32 %v992, %v993
  %v995 = vand.u32 %v994, 4294901760
  %996 = vmatpush.msra.mxu0 %v995
  %v997 = vand.u32 %v767, 4294901760
  %v998 = vsub.f32 %v767, %v997
  %v999 = vand.u32 %v998, 4294901760
  %v1000 = vsub.f32 %v998, %v999
  %v1001 = vand.u32 %v1000, 4294901760
  %1002 = vmatpush.msra.mxu0 %v1001
  %v1003 = vand.u32 %v765, 4294901760
  %v1004 = vsub.f32 %v765, %v1003
  %v1005 = vand.u32 %v1004, 4294901760
  %v1006 = vsub.f32 %v1004, %v1005
  %v1007 = vand.u32 %v1006, 4294901760
  %1008 = vmatpush.msra.mxu0 %v1007
  %v1009 = vand.u32 %v777, 4294901760
  %1010 = vmatmul.f32.gmra.mxu0 %v1009
  %v1011 = vpop.f32.mrf.mxu0
  %v1012 = vadd.f32 %v851, %v1011
  %v1013 = vand.u32 %v780, 4294901760
  %1014 = vmatmul.f32.gmra.mxu0 %v1013
  %v1015 = vpop.f32.mrf.mxu0
  %v1016 = vadd.f32 %v859, %v1015
  %v1017 = vand.u32 %v783, 4294901760
  %1018 = vmatmul.f32.gmra.mxu0 %v1017
  %v1019 = vpop.f32.mrf.mxu0
  %v1020 = vadd.f32 %v867, %v1019
  %v1021 = vand.u32 %v786, 4294901760
  %1022 = vmatmul.f32.gmra.mxu0 %v1021
  %v1023 = vpop.f32.mrf.mxu0
  %v1024 = vadd.f32 %v875, %v1023
  %v1025 = vand.u32 %v789, 4294901760
  %1026 = vmatmul.f32.gmra.mxu0 %v1025
  %v1027 = vpop.f32.mrf.mxu0
  %v1028 = vadd.f32 %v883, %v1027
  %v1029 = vand.u32 %v792, 4294901760
  %1030 = vmatmul.f32.gmra.mxu0 %v1029
  %v1031 = vpop.f32.mrf.mxu0
  %v1032 = vadd.f32 %v891, %v1031
  %v1033 = vand.u32 %v795, 4294901760
  %1034 = vmatmul.f32.gmra.mxu0 %v1033
  %v1035 = vpop.f32.mrf.mxu0
  %v1036 = vadd.f32 %v899, %v1035
  %v1037 = vand.u32 %v798, 4294901760
  %1038 = vmatmul.f32.gmra.mxu0 %v1037
  %v1039 = vpop.f32.mrf.mxu0
  %v1040 = vadd.f32 %v907, %v1039
  %v1041 = vand.u32 %v801, 4294901760
  %1042 = vmatmul.f32.gmra.mxu0 %v1041
  %v1043 = vpop.f32.mrf.mxu0
  %v1044 = vadd.f32 %v915, %v1043
  %v1045 = vand.u32 %v804, 4294901760
  %1046 = vmatmul.f32.gmra.mxu0 %v1045
  %v1047 = vpop.f32.mrf.mxu0
  %v1048 = vadd.f32 %v923, %v1047
  %v1049 = vand.u32 %v807, 4294901760
  %1050 = vmatmul.f32.gmra.mxu0 %v1049
  %v1051 = vpop.f32.mrf.mxu0
  %v1052 = vadd.f32 %v931, %v1051
  %v1053 = vand.u32 %v810, 4294901760
  %1054 = vmatmul.f32.gmra.mxu0 %v1053
  %v1055 = vpop.f32.mrf.mxu0
  %v1056 = vadd.f32 %v939, %v1055
  %v1057 = vand.u32 %v813, 4294901760
  %1058 = vmatmul.f32.gmra.mxu0 %v1057
  %v1059 = vpop.f32.mrf.mxu0
  %v1060 = vadd.f32 %v947, %v1059
  %v1061 = vand.u32 %v816, 4294901760
  %1062 = vmatmul.f32.gmra.mxu0 %v1061
  %v1063 = vpop.f32.mrf.mxu0
  %v1064 = vadd.f32 %v955, %v1063
  %v1065 = vand.u32 %v819, 4294901760
  %1066 = vmatmul.f32.gmra.mxu0 %v1065
  %v1067 = vpop.f32.mrf.mxu0
  %v1068 = vadd.f32 %v963, %v1067
  %v1069 = vand.u32 %v822, 4294901760
  %1070 = vmatmul.f32.gmra.mxu0 %v1069
  %v1071 = vpop.f32.mrf.mxu0
  %v1072 = vadd.f32 %v971, %v1071
  %1073 = vdwg.mxu0
  %1074 = vmatpush.msra.mxu0 0.0
  %1075 = vmatpush.msra.mxu0 0.0
  %1076 = vmatpush.msra.mxu0 0.0
  %1077 = vmatpush.msra.mxu0 0.0
  %1078 = vmatpush.msra.mxu0 0.0
  %1079 = vmatpush.msra.mxu0 0.0
  %1080 = vmatpush.msra.mxu0 0.0
  %1081 = vmatpush.msra.mxu0 0.0
  %1082 = vmatpush.msra.mxu0 0.0
  %1083 = vmatpush.msra.mxu0 0.0
  %1084 = vmatpush.msra.mxu0 0.0
  %1085 = vmatpush.msra.mxu0 0.0
  %v1086 = vand.u32 %v771, 4294901760
  %v1087 = vsub.f32 %v771, %v1086
  %1088 = vmatpush.msra.mxu0 %v1087
  %v1089 = vand.u32 %v769, 4294901760
  %v1090 = vsub.f32 %v769, %v1089
  %1091 = vmatpush.msra.mxu0 %v1090
  %v1092 = vand.u32 %v767, 4294901760
  %v1093 = vsub.f32 %v767, %v1092
  %1094 = vmatpush.msra.mxu0 %v1093
  %v1095 = vand.u32 %v765, 4294901760
  %v1096 = vsub.f32 %v765, %v1095
  %1097 = vmatpush.msra.mxu0 %v1096
  %v1098 = vand.u32 %v777, 4294901760
  %v1099 = vsub.f32 %v777, %v1098
  %1100 = vmatmul.f32.gmra.mxu0 %v1099
  %v1101 = vpop.f32.mrf.mxu0
  %v1102 = vadd.f32 %v1012, %v1101
  %v1103 = vand.u32 %v780, 4294901760
  %v1104 = vsub.f32 %v780, %v1103
  %1105 = vmatmul.f32.gmra.mxu0 %v1104
  %v1106 = vpop.f32.mrf.mxu0
  %v1107 = vadd.f32 %v1016, %v1106
  %v1108 = vand.u32 %v783, 4294901760
  %v1109 = vsub.f32 %v783, %v1108
  %1110 = vmatmul.f32.gmra.mxu0 %v1109
  %v1111 = vpop.f32.mrf.mxu0
  %v1112 = vadd.f32 %v1020, %v1111
  %v1113 = vand.u32 %v786, 4294901760
  %v1114 = vsub.f32 %v786, %v1113
  %1115 = vmatmul.f32.gmra.mxu0 %v1114
  %v1116 = vpop.f32.mrf.mxu0
  %v1117 = vadd.f32 %v1024, %v1116
  %v1118 = vand.u32 %v789, 4294901760
  %v1119 = vsub.f32 %v789, %v1118
  %1120 = vmatmul.f32.gmra.mxu0 %v1119
  %v1121 = vpop.f32.mrf.mxu0
  %v1122 = vadd.f32 %v1028, %v1121
  %v1123 = vand.u32 %v792, 4294901760
  %v1124 = vsub.f32 %v792, %v1123
  %1125 = vmatmul.f32.gmra.mxu0 %v1124
  %v1126 = vpop.f32.mrf.mxu0
  %v1127 = vadd.f32 %v1032, %v1126
  %v1128 = vand.u32 %v795, 4294901760
  %v1129 = vsub.f32 %v795, %v1128
  %1130 = vmatmul.f32.gmra.mxu0 %v1129
  %v1131 = vpop.f32.mrf.mxu0
  %v1132 = vadd.f32 %v1036, %v1131
  %v1133 = vand.u32 %v798, 4294901760
  %v1134 = vsub.f32 %v798, %v1133
  %1135 = vmatmul.f32.gmra.mxu0 %v1134
  %v1136 = vpop.f32.mrf.mxu0
  %v1137 = vadd.f32 %v1040, %v1136
  %v1138 = vand.u32 %v801, 4294901760
  %v1139 = vsub.f32 %v801, %v1138
  %1140 = vmatmul.f32.gmra.mxu0 %v1139
  %v1141 = vpop.f32.mrf.mxu0
  %v1142 = vadd.f32 %v1044, %v1141
  %v1143 = vand.u32 %v804, 4294901760
  %v1144 = vsub.f32 %v804, %v1143
  %1145 = vmatmul.f32.gmra.mxu0 %v1144
  %v1146 = vpop.f32.mrf.mxu0
  %v1147 = vadd.f32 %v1048, %v1146
  %v1148 = vand.u32 %v807, 4294901760
  %v1149 = vsub.f32 %v807, %v1148
  %1150 = vmatmul.f32.gmra.mxu0 %v1149
  %v1151 = vpop.f32.mrf.mxu0
  %v1152 = vadd.f32 %v1052, %v1151
  %v1153 = vand.u32 %v810, 4294901760
  %v1154 = vsub.f32 %v810, %v1153
  %1155 = vmatmul.f32.gmra.mxu0 %v1154
  %v1156 = vpop.f32.mrf.mxu0
  %v1157 = vadd.f32 %v1056, %v1156
  %v1158 = vand.u32 %v813, 4294901760
  %v1159 = vsub.f32 %v813, %v1158
  %1160 = vmatmul.f32.gmra.mxu0 %v1159
  %v1161 = vpop.f32.mrf.mxu0
  %v1162 = vadd.f32 %v1060, %v1161
  %v1163 = vand.u32 %v816, 4294901760
  %v1164 = vsub.f32 %v816, %v1163
  %1165 = vmatmul.f32.gmra.mxu0 %v1164
  %v1166 = vpop.f32.mrf.mxu0
  %v1167 = vadd.f32 %v1064, %v1166
  %v1168 = vand.u32 %v819, 4294901760
  %v1169 = vsub.f32 %v819, %v1168
  %1170 = vmatmul.f32.gmra.mxu0 %v1169
  %v1171 = vpop.f32.mrf.mxu0
  %v1172 = vadd.f32 %v1068, %v1171
  %v1173 = vand.u32 %v822, 4294901760
  %v1174 = vsub.f32 %v822, %v1173
  %1175 = vmatmul.f32.gmra.mxu0 %v1174
  %v1176 = vpop.f32.mrf.mxu0
  %v1177 = vadd.f32 %v1072, %v1176
  %1178 = vdwg.mxu0
  %1179 = vmatpush.msra.mxu0 0.0
  %1180 = vmatpush.msra.mxu0 0.0
  %1181 = vmatpush.msra.mxu0 0.0
  %1182 = vmatpush.msra.mxu0 0.0
  %1183 = vmatpush.msra.mxu0 0.0
  %1184 = vmatpush.msra.mxu0 0.0
  %1185 = vmatpush.msra.mxu0 0.0
  %1186 = vmatpush.msra.mxu0 0.0
  %1187 = vmatpush.msra.mxu0 0.0
  %1188 = vmatpush.msra.mxu0 0.0
  %1189 = vmatpush.msra.mxu0 0.0
  %1190 = vmatpush.msra.mxu0 0.0
  %v1191 = vand.u32 %v771, 4294901760
  %1192 = vmatpush.msra.mxu0 %v1191
  %v1193 = vand.u32 %v769, 4294901760
  %1194 = vmatpush.msra.mxu0 %v1193
  %v1195 = vand.u32 %v767, 4294901760
  %1196 = vmatpush.msra.mxu0 %v1195
  %v1197 = vand.u32 %v765, 4294901760
  %1198 = vmatpush.msra.mxu0 %v1197
  %v1199 = vand.u32 %v777, 4294901760
  %v1200 = vsub.f32 %v777, %v1199
  %v1201 = vand.u32 %v1200, 4294901760
  %1202 = vmatmul.f32.gmra.mxu0 %v1201
  %v1203 = vpop.f32.mrf.mxu0
  %v1204 = vadd.f32 %v1102, %v1203
  %v1205 = vand.u32 %v780, 4294901760
  %v1206 = vsub.f32 %v780, %v1205
  %v1207 = vand.u32 %v1206, 4294901760
  %1208 = vmatmul.f32.gmra.mxu0 %v1207
  %v1209 = vpop.f32.mrf.mxu0
  %v1210 = vadd.f32 %v1107, %v1209
  %v1211 = vand.u32 %v783, 4294901760
  %v1212 = vsub.f32 %v783, %v1211
  %v1213 = vand.u32 %v1212, 4294901760
  %1214 = vmatmul.f32.gmra.mxu0 %v1213
  %v1215 = vpop.f32.mrf.mxu0
  %v1216 = vadd.f32 %v1112, %v1215
  %v1217 = vand.u32 %v786, 4294901760
  %v1218 = vsub.f32 %v786, %v1217
  %v1219 = vand.u32 %v1218, 4294901760
  %1220 = vmatmul.f32.gmra.mxu0 %v1219
  %v1221 = vpop.f32.mrf.mxu0
  %v1222 = vadd.f32 %v1117, %v1221
  %v1223 = vand.u32 %v789, 4294901760
  %v1224 = vsub.f32 %v789, %v1223
  %v1225 = vand.u32 %v1224, 4294901760
  %1226 = vmatmul.f32.gmra.mxu0 %v1225
  %v1227 = vpop.f32.mrf.mxu0
  %v1228 = vadd.f32 %v1122, %v1227
  %v1229 = vand.u32 %v792, 4294901760
  %v1230 = vsub.f32 %v792, %v1229
  %v1231 = vand.u32 %v1230, 4294901760
  %1232 = vmatmul.f32.gmra.mxu0 %v1231
  %v1233 = vpop.f32.mrf.mxu0
  %v1234 = vadd.f32 %v1127, %v1233
  %v1235 = vand.u32 %v795, 4294901760
  %v1236 = vsub.f32 %v795, %v1235
  %v1237 = vand.u32 %v1236, 4294901760
  %1238 = vmatmul.f32.gmra.mxu0 %v1237
  %v1239 = vpop.f32.mrf.mxu0
  %v1240 = vadd.f32 %v1132, %v1239
  %v1241 = vand.u32 %v798, 4294901760
  %v1242 = vsub.f32 %v798, %v1241
  %v1243 = vand.u32 %v1242, 4294901760
  %1244 = vmatmul.f32.gmra.mxu0 %v1243
  %v1245 = vpop.f32.mrf.mxu0
  %v1246 = vadd.f32 %v1137, %v1245
  %v1247 = vand.u32 %v801, 4294901760
  %v1248 = vsub.f32 %v801, %v1247
  %v1249 = vand.u32 %v1248, 4294901760
  %1250 = vmatmul.f32.gmra.mxu0 %v1249
  %v1251 = vpop.f32.mrf.mxu0
  %v1252 = vadd.f32 %v1142, %v1251
  %v1253 = vand.u32 %v804, 4294901760
  %v1254 = vsub.f32 %v804, %v1253
  %v1255 = vand.u32 %v1254, 4294901760
  %1256 = vmatmul.f32.gmra.mxu0 %v1255
  %v1257 = vpop.f32.mrf.mxu0
  %v1258 = vadd.f32 %v1147, %v1257
  %v1259 = vand.u32 %v807, 4294901760
  %v1260 = vsub.f32 %v807, %v1259
  %v1261 = vand.u32 %v1260, 4294901760
  %1262 = vmatmul.f32.gmra.mxu0 %v1261
  %v1263 = vpop.f32.mrf.mxu0
  %v1264 = vadd.f32 %v1152, %v1263
  %v1265 = vand.u32 %v810, 4294901760
  %v1266 = vsub.f32 %v810, %v1265
  %v1267 = vand.u32 %v1266, 4294901760
  %1268 = vmatmul.f32.gmra.mxu0 %v1267
  %v1269 = vpop.f32.mrf.mxu0
  %v1270 = vadd.f32 %v1157, %v1269
  %v1271 = vand.u32 %v813, 4294901760
  %v1272 = vsub.f32 %v813, %v1271
  %v1273 = vand.u32 %v1272, 4294901760
  %1274 = vmatmul.f32.gmra.mxu0 %v1273
  %v1275 = vpop.f32.mrf.mxu0
  %v1276 = vadd.f32 %v1162, %v1275
  %v1277 = vand.u32 %v816, 4294901760
  %v1278 = vsub.f32 %v816, %v1277
  %v1279 = vand.u32 %v1278, 4294901760
  %1280 = vmatmul.f32.gmra.mxu0 %v1279
  %v1281 = vpop.f32.mrf.mxu0
  %v1282 = vadd.f32 %v1167, %v1281
  %v1283 = vand.u32 %v819, 4294901760
  %v1284 = vsub.f32 %v819, %v1283
  %v1285 = vand.u32 %v1284, 4294901760
  %1286 = vmatmul.f32.gmra.mxu0 %v1285
  %v1287 = vpop.f32.mrf.mxu0
  %v1288 = vadd.f32 %v1172, %v1287
  %v1289 = vand.u32 %v822, 4294901760
  %v1290 = vsub.f32 %v822, %v1289
  %v1291 = vand.u32 %v1290, 4294901760
  %1292 = vmatmul.f32.gmra.mxu0 %v1291
  %v1293 = vpop.f32.mrf.mxu0
  %v1294 = vadd.f32 %v1177, %v1293
  %1295 = vdwg.mxu0
  %1296 = vmatpush.msra.mxu0 0.0
  %1297 = vmatpush.msra.mxu0 0.0
  %1298 = vmatpush.msra.mxu0 0.0
  %1299 = vmatpush.msra.mxu0 0.0
  %1300 = vmatpush.msra.mxu0 0.0
  %1301 = vmatpush.msra.mxu0 0.0
  %1302 = vmatpush.msra.mxu0 0.0
  %1303 = vmatpush.msra.mxu0 0.0
  %1304 = vmatpush.msra.mxu0 0.0
  %1305 = vmatpush.msra.mxu0 0.0
  %1306 = vmatpush.msra.mxu0 0.0
  %1307 = vmatpush.msra.mxu0 0.0
  %v1308 = vand.u32 %v771, 4294901760
  %v1309 = vsub.f32 %v771, %v1308
  %v1310 = vand.u32 %v1309, 4294901760
  %1311 = vmatpush.msra.mxu0 %v1310
  %v1312 = vand.u32 %v769, 4294901760
  %v1313 = vsub.f32 %v769, %v1312
  %v1314 = vand.u32 %v1313, 4294901760
  %1315 = vmatpush.msra.mxu0 %v1314
  %v1316 = vand.u32 %v767, 4294901760
  %v1317 = vsub.f32 %v767, %v1316
  %v1318 = vand.u32 %v1317, 4294901760
  %1319 = vmatpush.msra.mxu0 %v1318
  %v1320 = vand.u32 %v765, 4294901760
  %v1321 = vsub.f32 %v765, %v1320
  %v1322 = vand.u32 %v1321, 4294901760
  %1323 = vmatpush.msra.mxu0 %v1322
  %v1324 = vand.u32 %v777, 4294901760
  %1325 = vmatmul.f32.gmra.mxu0 %v1324
  %v1326 = vpop.f32.mrf.mxu0
  %v1327 = vadd.f32 %v1204, %v1326
  %v1328 = vand.u32 %v780, 4294901760
  %1329 = vmatmul.f32.gmra.mxu0 %v1328
  %v1330 = vpop.f32.mrf.mxu0
  %v1331 = vadd.f32 %v1210, %v1330
  %v1332 = vand.u32 %v783, 4294901760
  %1333 = vmatmul.f32.gmra.mxu0 %v1332
  %v1334 = vpop.f32.mrf.mxu0
  %v1335 = vadd.f32 %v1216, %v1334
  %v1336 = vand.u32 %v786, 4294901760
  %1337 = vmatmul.f32.gmra.mxu0 %v1336
  %v1338 = vpop.f32.mrf.mxu0
  %v1339 = vadd.f32 %v1222, %v1338
  %v1340 = vand.u32 %v789, 4294901760
  %1341 = vmatmul.f32.gmra.mxu0 %v1340
  %v1342 = vpop.f32.mrf.mxu0
  %v1343 = vadd.f32 %v1228, %v1342
  %v1344 = vand.u32 %v792, 4294901760
  %1345 = vmatmul.f32.gmra.mxu0 %v1344
  %v1346 = vpop.f32.mrf.mxu0
  %v1347 = vadd.f32 %v1234, %v1346
  %v1348 = vand.u32 %v795, 4294901760
  %1349 = vmatmul.f32.gmra.mxu0 %v1348
  %v1350 = vpop.f32.mrf.mxu0
  %v1351 = vadd.f32 %v1240, %v1350
  %v1352 = vand.u32 %v798, 4294901760
  %1353 = vmatmul.f32.gmra.mxu0 %v1352
  %v1354 = vpop.f32.mrf.mxu0
  %v1355 = vadd.f32 %v1246, %v1354
  %v1356 = vand.u32 %v801, 4294901760
  %1357 = vmatmul.f32.gmra.mxu0 %v1356
  %v1358 = vpop.f32.mrf.mxu0
  %v1359 = vadd.f32 %v1252, %v1358
  %v1360 = vand.u32 %v804, 4294901760
  %1361 = vmatmul.f32.gmra.mxu0 %v1360
  %v1362 = vpop.f32.mrf.mxu0
  %v1363 = vadd.f32 %v1258, %v1362
  %v1364 = vand.u32 %v807, 4294901760
  %1365 = vmatmul.f32.gmra.mxu0 %v1364
  %v1366 = vpop.f32.mrf.mxu0
  %v1367 = vadd.f32 %v1264, %v1366
  %v1368 = vand.u32 %v810, 4294901760
  %1369 = vmatmul.f32.gmra.mxu0 %v1368
  %v1370 = vpop.f32.mrf.mxu0
  %v1371 = vadd.f32 %v1270, %v1370
  %v1372 = vand.u32 %v813, 4294901760
  %1373 = vmatmul.f32.gmra.mxu0 %v1372
  %v1374 = vpop.f32.mrf.mxu0
  %v1375 = vadd.f32 %v1276, %v1374
  %v1376 = vand.u32 %v816, 4294901760
  %1377 = vmatmul.f32.gmra.mxu0 %v1376
  %v1378 = vpop.f32.mrf.mxu0
  %v1379 = vadd.f32 %v1282, %v1378
  %v1380 = vand.u32 %v819, 4294901760
  %1381 = vmatmul.f32.gmra.mxu0 %v1380
  %v1382 = vpop.f32.mrf.mxu0
  %v1383 = vadd.f32 %v1288, %v1382
  %v1384 = vand.u32 %v822, 4294901760
  %1385 = vmatmul.f32.gmra.mxu0 %v1384
  %v1386 = vpop.f32.mrf.mxu0
  %v1387 = vadd.f32 %v1294, %v1386
  %1388 = vdwg.mxu0
  %1389 = vmatpush.msra.mxu0 0.0
  %1390 = vmatpush.msra.mxu0 0.0
  %1391 = vmatpush.msra.mxu0 0.0
  %1392 = vmatpush.msra.mxu0 0.0
  %1393 = vmatpush.msra.mxu0 0.0
  %1394 = vmatpush.msra.mxu0 0.0
  %1395 = vmatpush.msra.mxu0 0.0
  %1396 = vmatpush.msra.mxu0 0.0
  %1397 = vmatpush.msra.mxu0 0.0
  %1398 = vmatpush.msra.mxu0 0.0
  %1399 = vmatpush.msra.mxu0 0.0
  %1400 = vmatpush.msra.mxu0 0.0
  %v1401 = vand.u32 %v771, 4294901760
  %1402 = vmatpush.msra.mxu0 %v1401
  %v1403 = vand.u32 %v769, 4294901760
  %1404 = vmatpush.msra.mxu0 %v1403
  %v1405 = vand.u32 %v767, 4294901760
  %1406 = vmatpush.msra.mxu0 %v1405
  %v1407 = vand.u32 %v765, 4294901760
  %1408 = vmatpush.msra.mxu0 %v1407
  %v1409 = vand.u32 %v777, 4294901760
  %1410 = vmatmul.f32.gmra.mxu0 %v1409
  %v1411 = vpop.f32.mrf.mxu0
  %v1412 = vadd.f32 %v1327, %v1411
  %v1413 = vand.u32 %v780, 4294901760
  %1414 = vmatmul.f32.gmra.mxu0 %v1413
  %v1415 = vpop.f32.mrf.mxu0
  %v1416 = vadd.f32 %v1331, %v1415
  %v1417 = vand.u32 %v783, 4294901760
  %1418 = vmatmul.f32.gmra.mxu0 %v1417
  %v1419 = vpop.f32.mrf.mxu0
  %v1420 = vadd.f32 %v1335, %v1419
  %v1421 = vand.u32 %v786, 4294901760
  %1422 = vmatmul.f32.gmra.mxu0 %v1421
  %v1423 = vpop.f32.mrf.mxu0
  %v1424 = vadd.f32 %v1339, %v1423
  %v1425 = vand.u32 %v789, 4294901760
  %1426 = vmatmul.f32.gmra.mxu0 %v1425
  %v1427 = vpop.f32.mrf.mxu0
  %v1428 = vadd.f32 %v1343, %v1427
  %v1429 = vand.u32 %v792, 4294901760
  %1430 = vmatmul.f32.gmra.mxu0 %v1429
  %v1431 = vpop.f32.mrf.mxu0
  %v1432 = vadd.f32 %v1347, %v1431
  %v1433 = vand.u32 %v795, 4294901760
  %1434 = vmatmul.f32.gmra.mxu0 %v1433
  %v1435 = vpop.f32.mrf.mxu0
  %v1436 = vadd.f32 %v1351, %v1435
  %v1437 = vand.u32 %v798, 4294901760
  %1438 = vmatmul.f32.gmra.mxu0 %v1437
  %v1439 = vpop.f32.mrf.mxu0
  %v1440 = vadd.f32 %v1355, %v1439
  %v1441 = vand.u32 %v801, 4294901760
  %1442 = vmatmul.f32.gmra.mxu0 %v1441
  %v1443 = vpop.f32.mrf.mxu0
  %v1444 = vadd.f32 %v1359, %v1443
  %v1445 = vand.u32 %v804, 4294901760
  %1446 = vmatmul.f32.gmra.mxu0 %v1445
  %v1447 = vpop.f32.mrf.mxu0
  %v1448 = vadd.f32 %v1363, %v1447
  %v1449 = vand.u32 %v807, 4294901760
  %1450 = vmatmul.f32.gmra.mxu0 %v1449
  %v1451 = vpop.f32.mrf.mxu0
  %v1452 = vadd.f32 %v1367, %v1451
  %v1453 = vand.u32 %v810, 4294901760
  %1454 = vmatmul.f32.gmra.mxu0 %v1453
  %v1455 = vpop.f32.mrf.mxu0
  %v1456 = vadd.f32 %v1371, %v1455
  %v1457 = vand.u32 %v813, 4294901760
  %1458 = vmatmul.f32.gmra.mxu0 %v1457
  %v1459 = vpop.f32.mrf.mxu0
  %v1460 = vadd.f32 %v1375, %v1459
  %v1461 = vand.u32 %v816, 4294901760
  %1462 = vmatmul.f32.gmra.mxu0 %v1461
  %v1463 = vpop.f32.mrf.mxu0
  %v1464 = vadd.f32 %v1379, %v1463
  %v1465 = vand.u32 %v819, 4294901760
  %1466 = vmatmul.f32.gmra.mxu0 %v1465
  %v1467 = vpop.f32.mrf.mxu0
  %v1468 = vadd.f32 %v1383, %v1467
  %v1469 = vand.u32 %v822, 4294901760
  %1470 = vmatmul.f32.gmra.mxu0 %v1469
  %v1471 = vpop.f32.mrf.mxu0
  %v1472 = vadd.f32 %v1387, %v1471
  %1473 = vdwg.mxu0
  %v1474 = vld [vmem:[%s5] sm:$0xff]
  %v1475 = vld [vmem:[%s5 + $0x8] sm:$0xff]
  %v1476 = vld [vmem:[%s5 + $0x10] sm:$0xff]
  %v1477 = vld [vmem:[%s5 + $0x18] sm:$0xff]
  %v1478 = vld [vmem:[%s5 + $0x20] sm:$0xff]
  %v1479 = vld [vmem:[%s5 + $0x28] sm:$0xff]
  %v1480 = vld [vmem:[%s5 + $0x30] sm:$0xff]
  %v1481 = vld [vmem:[%s5 + $0x38] sm:$0xff]
  %v1482 = vld [vmem:[%s5 + $0x40] sm:$0xff]
  %v1483 = vld [vmem:[%s5 + $0x48] sm:$0xff]
  %v1484 = vld [vmem:[%s5 + $0x50] sm:$0xff]
  %v1485 = vld [vmem:[%s5 + $0x58] sm:$0xff]
  %v1486 = vld [vmem:[%s5 + $0x60] sm:$0xff]
  %v1487 = vld [vmem:[%s5 + $0x68] sm:$0xff]
  %v1488 = vld [vmem:[%s5 + $0x70] sm:$0xff]
  %v1489 = vld [vmem:[%s5 + $0x78] sm:$0xff]
  %v1491 = vsel %vm45, %v1474, 0
  %v1494 = vsel %vm45, %v1475, 0
  %v1497 = vsel %vm45, %v1476, 0
  %v1500 = vsel %vm45, %v1477, 0
  %v1503 = vsel %vm45, %v1478, 0
  %v1506 = vsel %vm45, %v1479, 0
  %v1509 = vsel %vm45, %v1480, 0
  %v1512 = vsel %vm45, %v1481, 0
  %v1515 = vsel %vm45, %v1482, 0
  %v1518 = vsel %vm45, %v1483, 0
  %v1521 = vsel %vm45, %v1484, 0
  %v1524 = vsel %vm45, %v1485, 0
  %v1527 = vsel %vm45, %v1486, 0
  %v1530 = vsel %vm45, %v1487, 0
  %v1533 = vsel %vm45, %v1488, 0
  %v1536 = vsel %vm45, %v1489, 0
  %1538 = vmatpush.msra.mxu0 0.0
  %1539 = vmatpush.msra.mxu0 0.0
  %1540 = vmatpush.msra.mxu0 0.0
  %1541 = vmatpush.msra.mxu0 0.0
  %1542 = vmatpush.msra.mxu0 0.0
  %1543 = vmatpush.msra.mxu0 0.0
  %1544 = vmatpush.msra.mxu0 0.0
  %1545 = vmatpush.msra.mxu0 0.0
  %1546 = vmatpush.msra.mxu0 0.0
  %1547 = vmatpush.msra.mxu0 0.0
  %1548 = vmatpush.msra.mxu0 0.0
  %1549 = vmatpush.msra.mxu0 0.0
  %v1550 = vand.u32 %v28, 4294901760
  %1551 = vmatpush.msra.mxu0 %v1550
  %v1552 = vand.u32 %v27, 4294901760
  %1553 = vmatpush.msra.mxu0 %v1552
  %v1554 = vand.u32 %v26, 4294901760
  %1555 = vmatpush.msra.mxu0 %v1554
  %v1556 = vand.u32 %v25, 4294901760
  %1557 = vmatpush.msra.mxu0 %v1556
  %v1558 = vand.u32 %v1491, 4294901760
  %v1559 = vsub.f32 %v1491, %v1558
  %v1560 = vand.u32 %v1559, 4294901760
  %v1561 = vsub.f32 %v1559, %v1560
  %v1562 = vand.u32 %v1561, 4294901760
  %1563 = vmatmul.f32.gmra.mxu0 %v1562
  %v1564 = vpop.f32.mrf.mxu0
  %v1565 = vadd.f32 0.0, %v1564
  %v1566 = vand.u32 %v1494, 4294901760
  %v1567 = vsub.f32 %v1494, %v1566
  %v1568 = vand.u32 %v1567, 4294901760
  %v1569 = vsub.f32 %v1567, %v1568
  %v1570 = vand.u32 %v1569, 4294901760
  %1571 = vmatmul.f32.gmra.mxu0 %v1570
  %v1572 = vpop.f32.mrf.mxu0
  %v1573 = vadd.f32 0.0, %v1572
  %v1574 = vand.u32 %v1497, 4294901760
  %v1575 = vsub.f32 %v1497, %v1574
  %v1576 = vand.u32 %v1575, 4294901760
  %v1577 = vsub.f32 %v1575, %v1576
  %v1578 = vand.u32 %v1577, 4294901760
  %1579 = vmatmul.f32.gmra.mxu0 %v1578
  %v1580 = vpop.f32.mrf.mxu0
  %v1581 = vadd.f32 0.0, %v1580
  %v1582 = vand.u32 %v1500, 4294901760
  %v1583 = vsub.f32 %v1500, %v1582
  %v1584 = vand.u32 %v1583, 4294901760
  %v1585 = vsub.f32 %v1583, %v1584
  %v1586 = vand.u32 %v1585, 4294901760
  %1587 = vmatmul.f32.gmra.mxu0 %v1586
  %v1588 = vpop.f32.mrf.mxu0
  %v1589 = vadd.f32 0.0, %v1588
  %v1590 = vand.u32 %v1503, 4294901760
  %v1591 = vsub.f32 %v1503, %v1590
  %v1592 = vand.u32 %v1591, 4294901760
  %v1593 = vsub.f32 %v1591, %v1592
  %v1594 = vand.u32 %v1593, 4294901760
  %1595 = vmatmul.f32.gmra.mxu0 %v1594
  %v1596 = vpop.f32.mrf.mxu0
  %v1597 = vadd.f32 0.0, %v1596
  %v1598 = vand.u32 %v1506, 4294901760
  %v1599 = vsub.f32 %v1506, %v1598
  %v1600 = vand.u32 %v1599, 4294901760
  %v1601 = vsub.f32 %v1599, %v1600
  %v1602 = vand.u32 %v1601, 4294901760
  %1603 = vmatmul.f32.gmra.mxu0 %v1602
  %v1604 = vpop.f32.mrf.mxu0
  %v1605 = vadd.f32 0.0, %v1604
  %v1606 = vand.u32 %v1509, 4294901760
  %v1607 = vsub.f32 %v1509, %v1606
  %v1608 = vand.u32 %v1607, 4294901760
  %v1609 = vsub.f32 %v1607, %v1608
  %v1610 = vand.u32 %v1609, 4294901760
  %1611 = vmatmul.f32.gmra.mxu0 %v1610
  %v1612 = vpop.f32.mrf.mxu0
  %v1613 = vadd.f32 0.0, %v1612
  %v1614 = vand.u32 %v1512, 4294901760
  %v1615 = vsub.f32 %v1512, %v1614
  %v1616 = vand.u32 %v1615, 4294901760
  %v1617 = vsub.f32 %v1615, %v1616
  %v1618 = vand.u32 %v1617, 4294901760
  %1619 = vmatmul.f32.gmra.mxu0 %v1618
  %v1620 = vpop.f32.mrf.mxu0
  %v1621 = vadd.f32 0.0, %v1620
  %v1622 = vand.u32 %v1515, 4294901760
  %v1623 = vsub.f32 %v1515, %v1622
  %v1624 = vand.u32 %v1623, 4294901760
  %v1625 = vsub.f32 %v1623, %v1624
  %v1626 = vand.u32 %v1625, 4294901760
  %1627 = vmatmul.f32.gmra.mxu0 %v1626
  %v1628 = vpop.f32.mrf.mxu0
  %v1629 = vadd.f32 0.0, %v1628
  %v1630 = vand.u32 %v1518, 4294901760
  %v1631 = vsub.f32 %v1518, %v1630
  %v1632 = vand.u32 %v1631, 4294901760
  %v1633 = vsub.f32 %v1631, %v1632
  %v1634 = vand.u32 %v1633, 4294901760
  %1635 = vmatmul.f32.gmra.mxu0 %v1634
  %v1636 = vpop.f32.mrf.mxu0
  %v1637 = vadd.f32 0.0, %v1636
  %v1638 = vand.u32 %v1521, 4294901760
  %v1639 = vsub.f32 %v1521, %v1638
  %v1640 = vand.u32 %v1639, 4294901760
  %v1641 = vsub.f32 %v1639, %v1640
  %v1642 = vand.u32 %v1641, 4294901760
  %1643 = vmatmul.f32.gmra.mxu0 %v1642
  %v1644 = vpop.f32.mrf.mxu0
  %v1645 = vadd.f32 0.0, %v1644
  %v1646 = vand.u32 %v1524, 4294901760
  %v1647 = vsub.f32 %v1524, %v1646
  %v1648 = vand.u32 %v1647, 4294901760
  %v1649 = vsub.f32 %v1647, %v1648
  %v1650 = vand.u32 %v1649, 4294901760
  %1651 = vmatmul.f32.gmra.mxu0 %v1650
  %v1652 = vpop.f32.mrf.mxu0
  %v1653 = vadd.f32 0.0, %v1652
  %v1654 = vand.u32 %v1527, 4294901760
  %v1655 = vsub.f32 %v1527, %v1654
  %v1656 = vand.u32 %v1655, 4294901760
  %v1657 = vsub.f32 %v1655, %v1656
  %v1658 = vand.u32 %v1657, 4294901760
  %1659 = vmatmul.f32.gmra.mxu0 %v1658
  %v1660 = vpop.f32.mrf.mxu0
  %v1661 = vadd.f32 0.0, %v1660
  %v1662 = vand.u32 %v1530, 4294901760
  %v1663 = vsub.f32 %v1530, %v1662
  %v1664 = vand.u32 %v1663, 4294901760
  %v1665 = vsub.f32 %v1663, %v1664
  %v1666 = vand.u32 %v1665, 4294901760
  %1667 = vmatmul.f32.gmra.mxu0 %v1666
  %v1668 = vpop.f32.mrf.mxu0
  %v1669 = vadd.f32 0.0, %v1668
  %v1670 = vand.u32 %v1533, 4294901760
  %v1671 = vsub.f32 %v1533, %v1670
  %v1672 = vand.u32 %v1671, 4294901760
  %v1673 = vsub.f32 %v1671, %v1672
  %v1674 = vand.u32 %v1673, 4294901760
  %1675 = vmatmul.f32.gmra.mxu0 %v1674
  %v1676 = vpop.f32.mrf.mxu0
  %v1677 = vadd.f32 0.0, %v1676
  %v1678 = vand.u32 %v1536, 4294901760
  %v1679 = vsub.f32 %v1536, %v1678
  %v1680 = vand.u32 %v1679, 4294901760
  %v1681 = vsub.f32 %v1679, %v1680
  %v1682 = vand.u32 %v1681, 4294901760
  %1683 = vmatmul.f32.gmra.mxu0 %v1682
  %v1684 = vpop.f32.mrf.mxu0
  %v1685 = vadd.f32 0.0, %v1684
  %1686 = vdwg.mxu0
  %1687 = vmatpush.msra.mxu0 0.0
  %1688 = vmatpush.msra.mxu0 0.0
  %1689 = vmatpush.msra.mxu0 0.0
  %1690 = vmatpush.msra.mxu0 0.0
  %1691 = vmatpush.msra.mxu0 0.0
  %1692 = vmatpush.msra.mxu0 0.0
  %1693 = vmatpush.msra.mxu0 0.0
  %1694 = vmatpush.msra.mxu0 0.0
  %1695 = vmatpush.msra.mxu0 0.0
  %1696 = vmatpush.msra.mxu0 0.0
  %1697 = vmatpush.msra.mxu0 0.0
  %1698 = vmatpush.msra.mxu0 0.0
  %v1699 = vand.u32 %v28, 4294901760
  %v1700 = vsub.f32 %v28, %v1699
  %v1701 = vand.u32 %v1700, 4294901760
  %v1702 = vsub.f32 %v1700, %v1701
  %v1703 = vand.u32 %v1702, 4294901760
  %1704 = vmatpush.msra.mxu0 %v1703
  %v1705 = vand.u32 %v27, 4294901760
  %v1706 = vsub.f32 %v27, %v1705
  %v1707 = vand.u32 %v1706, 4294901760
  %v1708 = vsub.f32 %v1706, %v1707
  %v1709 = vand.u32 %v1708, 4294901760
  %1710 = vmatpush.msra.mxu0 %v1709
  %v1711 = vand.u32 %v26, 4294901760
  %v1712 = vsub.f32 %v26, %v1711
  %v1713 = vand.u32 %v1712, 4294901760
  %v1714 = vsub.f32 %v1712, %v1713
  %v1715 = vand.u32 %v1714, 4294901760
  %1716 = vmatpush.msra.mxu0 %v1715
  %v1717 = vand.u32 %v25, 4294901760
  %v1718 = vsub.f32 %v25, %v1717
  %v1719 = vand.u32 %v1718, 4294901760
  %v1720 = vsub.f32 %v1718, %v1719
  %v1721 = vand.u32 %v1720, 4294901760
  %1722 = vmatpush.msra.mxu0 %v1721
  %v1723 = vand.u32 %v1491, 4294901760
  %1724 = vmatmul.f32.gmra.mxu0 %v1723
  %v1725 = vpop.f32.mrf.mxu0
  %v1726 = vadd.f32 %v1565, %v1725
  %v1727 = vand.u32 %v1494, 4294901760
  %1728 = vmatmul.f32.gmra.mxu0 %v1727
  %v1729 = vpop.f32.mrf.mxu0
  %v1730 = vadd.f32 %v1573, %v1729
  %v1731 = vand.u32 %v1497, 4294901760
  %1732 = vmatmul.f32.gmra.mxu0 %v1731
  %v1733 = vpop.f32.mrf.mxu0
  %v1734 = vadd.f32 %v1581, %v1733
  %v1735 = vand.u32 %v1500, 4294901760
  %1736 = vmatmul.f32.gmra.mxu0 %v1735
  %v1737 = vpop.f32.mrf.mxu0
  %v1738 = vadd.f32 %v1589, %v1737
  %v1739 = vand.u32 %v1503, 4294901760
  %1740 = vmatmul.f32.gmra.mxu0 %v1739
  %v1741 = vpop.f32.mrf.mxu0
  %v1742 = vadd.f32 %v1597, %v1741
  %v1743 = vand.u32 %v1506, 4294901760
  %1744 = vmatmul.f32.gmra.mxu0 %v1743
  %v1745 = vpop.f32.mrf.mxu0
  %v1746 = vadd.f32 %v1605, %v1745
  %v1747 = vand.u32 %v1509, 4294901760
  %1748 = vmatmul.f32.gmra.mxu0 %v1747
  %v1749 = vpop.f32.mrf.mxu0
  %v1750 = vadd.f32 %v1613, %v1749
  %v1751 = vand.u32 %v1512, 4294901760
  %1752 = vmatmul.f32.gmra.mxu0 %v1751
  %v1753 = vpop.f32.mrf.mxu0
  %v1754 = vadd.f32 %v1621, %v1753
  %v1755 = vand.u32 %v1515, 4294901760
  %1756 = vmatmul.f32.gmra.mxu0 %v1755
  %v1757 = vpop.f32.mrf.mxu0
  %v1758 = vadd.f32 %v1629, %v1757
  %v1759 = vand.u32 %v1518, 4294901760
  %1760 = vmatmul.f32.gmra.mxu0 %v1759
  %v1761 = vpop.f32.mrf.mxu0
  %v1762 = vadd.f32 %v1637, %v1761
  %v1763 = vand.u32 %v1521, 4294901760
  %1764 = vmatmul.f32.gmra.mxu0 %v1763
  %v1765 = vpop.f32.mrf.mxu0
  %v1766 = vadd.f32 %v1645, %v1765
  %v1767 = vand.u32 %v1524, 4294901760
  %1768 = vmatmul.f32.gmra.mxu0 %v1767
  %v1769 = vpop.f32.mrf.mxu0
  %v1770 = vadd.f32 %v1653, %v1769
  %v1771 = vand.u32 %v1527, 4294901760
  %1772 = vmatmul.f32.gmra.mxu0 %v1771
  %v1773 = vpop.f32.mrf.mxu0
  %v1774 = vadd.f32 %v1661, %v1773
  %v1775 = vand.u32 %v1530, 4294901760
  %1776 = vmatmul.f32.gmra.mxu0 %v1775
  %v1777 = vpop.f32.mrf.mxu0
  %v1778 = vadd.f32 %v1669, %v1777
  %v1779 = vand.u32 %v1533, 4294901760
  %1780 = vmatmul.f32.gmra.mxu0 %v1779
  %v1781 = vpop.f32.mrf.mxu0
  %v1782 = vadd.f32 %v1677, %v1781
  %v1783 = vand.u32 %v1536, 4294901760
  %1784 = vmatmul.f32.gmra.mxu0 %v1783
  %v1785 = vpop.f32.mrf.mxu0
  %v1786 = vadd.f32 %v1685, %v1785
  %1787 = vdwg.mxu0
  %1788 = vmatpush.msra.mxu0 0.0
  %1789 = vmatpush.msra.mxu0 0.0
  %1790 = vmatpush.msra.mxu0 0.0
  %1791 = vmatpush.msra.mxu0 0.0
  %1792 = vmatpush.msra.mxu0 0.0
  %1793 = vmatpush.msra.mxu0 0.0
  %1794 = vmatpush.msra.mxu0 0.0
  %1795 = vmatpush.msra.mxu0 0.0
  %1796 = vmatpush.msra.mxu0 0.0
  %1797 = vmatpush.msra.mxu0 0.0
  %1798 = vmatpush.msra.mxu0 0.0
  %1799 = vmatpush.msra.mxu0 0.0
  %v1800 = vand.u32 %v28, 4294901760
  %v1801 = vsub.f32 %v28, %v1800
  %1802 = vmatpush.msra.mxu0 %v1801
  %v1803 = vand.u32 %v27, 4294901760
  %v1804 = vsub.f32 %v27, %v1803
  %1805 = vmatpush.msra.mxu0 %v1804
  %v1806 = vand.u32 %v26, 4294901760
  %v1807 = vsub.f32 %v26, %v1806
  %1808 = vmatpush.msra.mxu0 %v1807
  %v1809 = vand.u32 %v25, 4294901760
  %v1810 = vsub.f32 %v25, %v1809
  %1811 = vmatpush.msra.mxu0 %v1810
  %v1812 = vand.u32 %v1491, 4294901760
  %v1813 = vsub.f32 %v1491, %v1812
  %1814 = vmatmul.f32.gmra.mxu0 %v1813
  %v1815 = vpop.f32.mrf.mxu0
  %v1816 = vadd.f32 %v1726, %v1815
  %v1817 = vand.u32 %v1494, 4294901760
  %v1818 = vsub.f32 %v1494, %v1817
  %1819 = vmatmul.f32.gmra.mxu0 %v1818
  %v1820 = vpop.f32.mrf.mxu0
  %v1821 = vadd.f32 %v1730, %v1820
  %v1822 = vand.u32 %v1497, 4294901760
  %v1823 = vsub.f32 %v1497, %v1822
  %1824 = vmatmul.f32.gmra.mxu0 %v1823
  %v1825 = vpop.f32.mrf.mxu0
  %v1826 = vadd.f32 %v1734, %v1825
  %v1827 = vand.u32 %v1500, 4294901760
  %v1828 = vsub.f32 %v1500, %v1827
  %1829 = vmatmul.f32.gmra.mxu0 %v1828
  %v1830 = vpop.f32.mrf.mxu0
  %v1831 = vadd.f32 %v1738, %v1830
  %v1832 = vand.u32 %v1503, 4294901760
  %v1833 = vsub.f32 %v1503, %v1832
  %1834 = vmatmul.f32.gmra.mxu0 %v1833
  %v1835 = vpop.f32.mrf.mxu0
  %v1836 = vadd.f32 %v1742, %v1835
  %v1837 = vand.u32 %v1506, 4294901760
  %v1838 = vsub.f32 %v1506, %v1837
  %1839 = vmatmul.f32.gmra.mxu0 %v1838
  %v1840 = vpop.f32.mrf.mxu0
  %v1841 = vadd.f32 %v1746, %v1840
  %v1842 = vand.u32 %v1509, 4294901760
  %v1843 = vsub.f32 %v1509, %v1842
  %1844 = vmatmul.f32.gmra.mxu0 %v1843
  %v1845 = vpop.f32.mrf.mxu0
  %v1846 = vadd.f32 %v1750, %v1845
  %v1847 = vand.u32 %v1512, 4294901760
  %v1848 = vsub.f32 %v1512, %v1847
  %1849 = vmatmul.f32.gmra.mxu0 %v1848
  %v1850 = vpop.f32.mrf.mxu0
  %v1851 = vadd.f32 %v1754, %v1850
  %v1852 = vand.u32 %v1515, 4294901760
  %v1853 = vsub.f32 %v1515, %v1852
  %1854 = vmatmul.f32.gmra.mxu0 %v1853
  %v1855 = vpop.f32.mrf.mxu0
  %v1856 = vadd.f32 %v1758, %v1855
  %v1857 = vand.u32 %v1518, 4294901760
  %v1858 = vsub.f32 %v1518, %v1857
  %1859 = vmatmul.f32.gmra.mxu0 %v1858
  %v1860 = vpop.f32.mrf.mxu0
  %v1861 = vadd.f32 %v1762, %v1860
  %v1862 = vand.u32 %v1521, 4294901760
  %v1863 = vsub.f32 %v1521, %v1862
  %1864 = vmatmul.f32.gmra.mxu0 %v1863
  %v1865 = vpop.f32.mrf.mxu0
  %v1866 = vadd.f32 %v1766, %v1865
  %v1867 = vand.u32 %v1524, 4294901760
  %v1868 = vsub.f32 %v1524, %v1867
  %1869 = vmatmul.f32.gmra.mxu0 %v1868
  %v1870 = vpop.f32.mrf.mxu0
  %v1871 = vadd.f32 %v1770, %v1870
  %v1872 = vand.u32 %v1527, 4294901760
  %v1873 = vsub.f32 %v1527, %v1872
  %1874 = vmatmul.f32.gmra.mxu0 %v1873
  %v1875 = vpop.f32.mrf.mxu0
  %v1876 = vadd.f32 %v1774, %v1875
  %v1877 = vand.u32 %v1530, 4294901760
  %v1878 = vsub.f32 %v1530, %v1877
  %1879 = vmatmul.f32.gmra.mxu0 %v1878
  %v1880 = vpop.f32.mrf.mxu0
  %v1881 = vadd.f32 %v1778, %v1880
  %v1882 = vand.u32 %v1533, 4294901760
  %v1883 = vsub.f32 %v1533, %v1882
  %1884 = vmatmul.f32.gmra.mxu0 %v1883
  %v1885 = vpop.f32.mrf.mxu0
  %v1886 = vadd.f32 %v1782, %v1885
  %v1887 = vand.u32 %v1536, 4294901760
  %v1888 = vsub.f32 %v1536, %v1887
  %1889 = vmatmul.f32.gmra.mxu0 %v1888
  %v1890 = vpop.f32.mrf.mxu0
  %v1891 = vadd.f32 %v1786, %v1890
  %1892 = vdwg.mxu0
  %1893 = vmatpush.msra.mxu0 0.0
  %1894 = vmatpush.msra.mxu0 0.0
  %1895 = vmatpush.msra.mxu0 0.0
  %1896 = vmatpush.msra.mxu0 0.0
  %1897 = vmatpush.msra.mxu0 0.0
  %1898 = vmatpush.msra.mxu0 0.0
  %1899 = vmatpush.msra.mxu0 0.0
  %1900 = vmatpush.msra.mxu0 0.0
  %1901 = vmatpush.msra.mxu0 0.0
  %1902 = vmatpush.msra.mxu0 0.0
  %1903 = vmatpush.msra.mxu0 0.0
  %1904 = vmatpush.msra.mxu0 0.0
  %v1905 = vand.u32 %v28, 4294901760
  %1906 = vmatpush.msra.mxu0 %v1905
  %v1907 = vand.u32 %v27, 4294901760
  %1908 = vmatpush.msra.mxu0 %v1907
  %v1909 = vand.u32 %v26, 4294901760
  %1910 = vmatpush.msra.mxu0 %v1909
  %v1911 = vand.u32 %v25, 4294901760
  %1912 = vmatpush.msra.mxu0 %v1911
  %v1913 = vand.u32 %v1491, 4294901760
  %v1914 = vsub.f32 %v1491, %v1913
  %v1915 = vand.u32 %v1914, 4294901760
  %1916 = vmatmul.f32.gmra.mxu0 %v1915
  %v1917 = vpop.f32.mrf.mxu0
  %v1918 = vadd.f32 %v1816, %v1917
  %v1919 = vand.u32 %v1494, 4294901760
  %v1920 = vsub.f32 %v1494, %v1919
  %v1921 = vand.u32 %v1920, 4294901760
  %1922 = vmatmul.f32.gmra.mxu0 %v1921
  %v1923 = vpop.f32.mrf.mxu0
  %v1924 = vadd.f32 %v1821, %v1923
  %v1925 = vand.u32 %v1497, 4294901760
  %v1926 = vsub.f32 %v1497, %v1925
  %v1927 = vand.u32 %v1926, 4294901760
  %1928 = vmatmul.f32.gmra.mxu0 %v1927
  %v1929 = vpop.f32.mrf.mxu0
  %v1930 = vadd.f32 %v1826, %v1929
  %v1931 = vand.u32 %v1500, 4294901760
  %v1932 = vsub.f32 %v1500, %v1931
  %v1933 = vand.u32 %v1932, 4294901760
  %1934 = vmatmul.f32.gmra.mxu0 %v1933
  %v1935 = vpop.f32.mrf.mxu0
  %v1936 = vadd.f32 %v1831, %v1935
  %v1937 = vand.u32 %v1503, 4294901760
  %v1938 = vsub.f32 %v1503, %v1937
  %v1939 = vand.u32 %v1938, 4294901760
  %1940 = vmatmul.f32.gmra.mxu0 %v1939
  %v1941 = vpop.f32.mrf.mxu0
  %v1942 = vadd.f32 %v1836, %v1941
  %v1943 = vand.u32 %v1506, 4294901760
  %v1944 = vsub.f32 %v1506, %v1943
  %v1945 = vand.u32 %v1944, 4294901760
  %1946 = vmatmul.f32.gmra.mxu0 %v1945
  %v1947 = vpop.f32.mrf.mxu0
  %v1948 = vadd.f32 %v1841, %v1947
  %v1949 = vand.u32 %v1509, 4294901760
  %v1950 = vsub.f32 %v1509, %v1949
  %v1951 = vand.u32 %v1950, 4294901760
  %1952 = vmatmul.f32.gmra.mxu0 %v1951
  %v1953 = vpop.f32.mrf.mxu0
  %v1954 = vadd.f32 %v1846, %v1953
  %v1955 = vand.u32 %v1512, 4294901760
  %v1956 = vsub.f32 %v1512, %v1955
  %v1957 = vand.u32 %v1956, 4294901760
  %1958 = vmatmul.f32.gmra.mxu0 %v1957
  %v1959 = vpop.f32.mrf.mxu0
  %v1960 = vadd.f32 %v1851, %v1959
  %v1961 = vand.u32 %v1515, 4294901760
  %v1962 = vsub.f32 %v1515, %v1961
  %v1963 = vand.u32 %v1962, 4294901760
  %1964 = vmatmul.f32.gmra.mxu0 %v1963
  %v1965 = vpop.f32.mrf.mxu0
  %v1966 = vadd.f32 %v1856, %v1965
  %v1967 = vand.u32 %v1518, 4294901760
  %v1968 = vsub.f32 %v1518, %v1967
  %v1969 = vand.u32 %v1968, 4294901760
  %1970 = vmatmul.f32.gmra.mxu0 %v1969
  %v1971 = vpop.f32.mrf.mxu0
  %v1972 = vadd.f32 %v1861, %v1971
  %v1973 = vand.u32 %v1521, 4294901760
  %v1974 = vsub.f32 %v1521, %v1973
  %v1975 = vand.u32 %v1974, 4294901760
  %1976 = vmatmul.f32.gmra.mxu0 %v1975
  %v1977 = vpop.f32.mrf.mxu0
  %v1978 = vadd.f32 %v1866, %v1977
  %v1979 = vand.u32 %v1524, 4294901760
  %v1980 = vsub.f32 %v1524, %v1979
  %v1981 = vand.u32 %v1980, 4294901760
  %1982 = vmatmul.f32.gmra.mxu0 %v1981
  %v1983 = vpop.f32.mrf.mxu0
  %v1984 = vadd.f32 %v1871, %v1983
  %v1985 = vand.u32 %v1527, 4294901760
  %v1986 = vsub.f32 %v1527, %v1985
  %v1987 = vand.u32 %v1986, 4294901760
  %1988 = vmatmul.f32.gmra.mxu0 %v1987
  %v1989 = vpop.f32.mrf.mxu0
  %v1990 = vadd.f32 %v1876, %v1989
  %v1991 = vand.u32 %v1530, 4294901760
  %v1992 = vsub.f32 %v1530, %v1991
  %v1993 = vand.u32 %v1992, 4294901760
  %1994 = vmatmul.f32.gmra.mxu0 %v1993
  %v1995 = vpop.f32.mrf.mxu0
  %v1996 = vadd.f32 %v1881, %v1995
  %v1997 = vand.u32 %v1533, 4294901760
  %v1998 = vsub.f32 %v1533, %v1997
  %v1999 = vand.u32 %v1998, 4294901760
  %2000 = vmatmul.f32.gmra.mxu0 %v1999
  %v2001 = vpop.f32.mrf.mxu0
  %v2002 = vadd.f32 %v1886, %v2001
  %v2003 = vand.u32 %v1536, 4294901760
  %v2004 = vsub.f32 %v1536, %v2003
  %v2005 = vand.u32 %v2004, 4294901760
  %2006 = vmatmul.f32.gmra.mxu0 %v2005
  %v2007 = vpop.f32.mrf.mxu0
  %v2008 = vadd.f32 %v1891, %v2007
  %2009 = vdwg.mxu0
  %2010 = vmatpush.msra.mxu0 0.0
  %2011 = vmatpush.msra.mxu0 0.0
  %2012 = vmatpush.msra.mxu0 0.0
  %2013 = vmatpush.msra.mxu0 0.0
  %2014 = vmatpush.msra.mxu0 0.0
  %2015 = vmatpush.msra.mxu0 0.0
  %2016 = vmatpush.msra.mxu0 0.0
  %2017 = vmatpush.msra.mxu0 0.0
  %2018 = vmatpush.msra.mxu0 0.0
  %2019 = vmatpush.msra.mxu0 0.0
  %2020 = vmatpush.msra.mxu0 0.0
  %2021 = vmatpush.msra.mxu0 0.0
  %v2022 = vand.u32 %v28, 4294901760
  %v2023 = vsub.f32 %v28, %v2022
  %v2024 = vand.u32 %v2023, 4294901760
  %2025 = vmatpush.msra.mxu0 %v2024
  %v2026 = vand.u32 %v27, 4294901760
  %v2027 = vsub.f32 %v27, %v2026
  %v2028 = vand.u32 %v2027, 4294901760
  %2029 = vmatpush.msra.mxu0 %v2028
  %v2030 = vand.u32 %v26, 4294901760
  %v2031 = vsub.f32 %v26, %v2030
  %v2032 = vand.u32 %v2031, 4294901760
  %2033 = vmatpush.msra.mxu0 %v2032
  %v2034 = vand.u32 %v25, 4294901760
  %v2035 = vsub.f32 %v25, %v2034
  %v2036 = vand.u32 %v2035, 4294901760
  %2037 = vmatpush.msra.mxu0 %v2036
  %v2038 = vand.u32 %v1491, 4294901760
  %2039 = vmatmul.f32.gmra.mxu0 %v2038
  %v2040 = vpop.f32.mrf.mxu0
  %v2041 = vadd.f32 %v1918, %v2040
  %v2042 = vand.u32 %v1494, 4294901760
  %2043 = vmatmul.f32.gmra.mxu0 %v2042
  %v2044 = vpop.f32.mrf.mxu0
  %v2045 = vadd.f32 %v1924, %v2044
  %v2046 = vand.u32 %v1497, 4294901760
  %2047 = vmatmul.f32.gmra.mxu0 %v2046
  %v2048 = vpop.f32.mrf.mxu0
  %v2049 = vadd.f32 %v1930, %v2048
  %v2050 = vand.u32 %v1500, 4294901760
  %2051 = vmatmul.f32.gmra.mxu0 %v2050
  %v2052 = vpop.f32.mrf.mxu0
  %v2053 = vadd.f32 %v1936, %v2052
  %v2054 = vand.u32 %v1503, 4294901760
  %2055 = vmatmul.f32.gmra.mxu0 %v2054
  %v2056 = vpop.f32.mrf.mxu0
  %v2057 = vadd.f32 %v1942, %v2056
  %v2058 = vand.u32 %v1506, 4294901760
  %2059 = vmatmul.f32.gmra.mxu0 %v2058
  %v2060 = vpop.f32.mrf.mxu0
  %v2061 = vadd.f32 %v1948, %v2060
  %v2062 = vand.u32 %v1509, 4294901760
  %2063 = vmatmul.f32.gmra.mxu0 %v2062
  %v2064 = vpop.f32.mrf.mxu0
  %v2065 = vadd.f32 %v1954, %v2064
  %v2066 = vand.u32 %v1512, 4294901760
  %2067 = vmatmul.f32.gmra.mxu0 %v2066
  %v2068 = vpop.f32.mrf.mxu0
  %v2069 = vadd.f32 %v1960, %v2068
  %v2070 = vand.u32 %v1515, 4294901760
  %2071 = vmatmul.f32.gmra.mxu0 %v2070
  %v2072 = vpop.f32.mrf.mxu0
  %v2073 = vadd.f32 %v1966, %v2072
  %v2074 = vand.u32 %v1518, 4294901760
  %2075 = vmatmul.f32.gmra.mxu0 %v2074
  %v2076 = vpop.f32.mrf.mxu0
  %v2077 = vadd.f32 %v1972, %v2076
  %v2078 = vand.u32 %v1521, 4294901760
  %2079 = vmatmul.f32.gmra.mxu0 %v2078
  %v2080 = vpop.f32.mrf.mxu0
  %v2081 = vadd.f32 %v1978, %v2080
  %v2082 = vand.u32 %v1524, 4294901760
  %2083 = vmatmul.f32.gmra.mxu0 %v2082
  %v2084 = vpop.f32.mrf.mxu0
  %v2085 = vadd.f32 %v1984, %v2084
  %v2086 = vand.u32 %v1527, 4294901760
  %2087 = vmatmul.f32.gmra.mxu0 %v2086
  %v2088 = vpop.f32.mrf.mxu0
  %v2089 = vadd.f32 %v1990, %v2088
  %v2090 = vand.u32 %v1530, 4294901760
  %2091 = vmatmul.f32.gmra.mxu0 %v2090
  %v2092 = vpop.f32.mrf.mxu0
  %v2093 = vadd.f32 %v1996, %v2092
  %v2094 = vand.u32 %v1533, 4294901760
  %2095 = vmatmul.f32.gmra.mxu0 %v2094
  %v2096 = vpop.f32.mrf.mxu0
  %v2097 = vadd.f32 %v2002, %v2096
  %v2098 = vand.u32 %v1536, 4294901760
  %2099 = vmatmul.f32.gmra.mxu0 %v2098
  %v2100 = vpop.f32.mrf.mxu0
  %v2101 = vadd.f32 %v2008, %v2100
  %2102 = vdwg.mxu0
  %2103 = vmatpush.msra.mxu0 0.0
  %2104 = vmatpush.msra.mxu0 0.0
  %2105 = vmatpush.msra.mxu0 0.0
  %2106 = vmatpush.msra.mxu0 0.0
  %2107 = vmatpush.msra.mxu0 0.0
  %2108 = vmatpush.msra.mxu0 0.0
  %2109 = vmatpush.msra.mxu0 0.0
  %2110 = vmatpush.msra.mxu0 0.0
  %2111 = vmatpush.msra.mxu0 0.0
  %2112 = vmatpush.msra.mxu0 0.0
  %2113 = vmatpush.msra.mxu0 0.0
  %2114 = vmatpush.msra.mxu0 0.0
  %v2115 = vand.u32 %v28, 4294901760
  %2116 = vmatpush.msra.mxu0 %v2115
  %v2117 = vand.u32 %v27, 4294901760
  %2118 = vmatpush.msra.mxu0 %v2117
  %v2119 = vand.u32 %v26, 4294901760
  %2120 = vmatpush.msra.mxu0 %v2119
  %v2121 = vand.u32 %v25, 4294901760
  %2122 = vmatpush.msra.mxu0 %v2121
  %v2123 = vand.u32 %v1491, 4294901760
  %2124 = vmatmul.f32.gmra.mxu0 %v2123
  %v2125 = vpop.f32.mrf.mxu0
  %v2126 = vadd.f32 %v2041, %v2125
  %v2127 = vand.u32 %v1494, 4294901760
  %2128 = vmatmul.f32.gmra.mxu0 %v2127
  %v2129 = vpop.f32.mrf.mxu0
  %v2130 = vadd.f32 %v2045, %v2129
  %v2131 = vand.u32 %v1497, 4294901760
  %2132 = vmatmul.f32.gmra.mxu0 %v2131
  %v2133 = vpop.f32.mrf.mxu0
  %v2134 = vadd.f32 %v2049, %v2133
  %v2135 = vand.u32 %v1500, 4294901760
  %2136 = vmatmul.f32.gmra.mxu0 %v2135
  %v2137 = vpop.f32.mrf.mxu0
  %v2138 = vadd.f32 %v2053, %v2137
  %v2139 = vand.u32 %v1503, 4294901760
  %2140 = vmatmul.f32.gmra.mxu0 %v2139
  %v2141 = vpop.f32.mrf.mxu0
  %v2142 = vadd.f32 %v2057, %v2141
  %v2143 = vand.u32 %v1506, 4294901760
  %2144 = vmatmul.f32.gmra.mxu0 %v2143
  %v2145 = vpop.f32.mrf.mxu0
  %v2146 = vadd.f32 %v2061, %v2145
  %v2147 = vand.u32 %v1509, 4294901760
  %2148 = vmatmul.f32.gmra.mxu0 %v2147
  %v2149 = vpop.f32.mrf.mxu0
  %v2150 = vadd.f32 %v2065, %v2149
  %v2151 = vand.u32 %v1512, 4294901760
  %2152 = vmatmul.f32.gmra.mxu0 %v2151
  %v2153 = vpop.f32.mrf.mxu0
  %v2154 = vadd.f32 %v2069, %v2153
  %v2155 = vand.u32 %v1515, 4294901760
  %2156 = vmatmul.f32.gmra.mxu0 %v2155
  %v2157 = vpop.f32.mrf.mxu0
  %v2158 = vadd.f32 %v2073, %v2157
  %v2159 = vand.u32 %v1518, 4294901760
  %2160 = vmatmul.f32.gmra.mxu0 %v2159
  %v2161 = vpop.f32.mrf.mxu0
  %v2162 = vadd.f32 %v2077, %v2161
  %v2163 = vand.u32 %v1521, 4294901760
  %2164 = vmatmul.f32.gmra.mxu0 %v2163
  %v2165 = vpop.f32.mrf.mxu0
  %v2166 = vadd.f32 %v2081, %v2165
  %v2167 = vand.u32 %v1524, 4294901760
  %2168 = vmatmul.f32.gmra.mxu0 %v2167
  %v2169 = vpop.f32.mrf.mxu0
  %v2170 = vadd.f32 %v2085, %v2169
  %v2171 = vand.u32 %v1527, 4294901760
  %2172 = vmatmul.f32.gmra.mxu0 %v2171
  %v2173 = vpop.f32.mrf.mxu0
  %v2174 = vadd.f32 %v2089, %v2173
  %v2175 = vand.u32 %v1530, 4294901760
  %2176 = vmatmul.f32.gmra.mxu0 %v2175
  %v2177 = vpop.f32.mrf.mxu0
  %v2178 = vadd.f32 %v2093, %v2177
  %v2179 = vand.u32 %v1533, 4294901760
  %2180 = vmatmul.f32.gmra.mxu0 %v2179
  %v2181 = vpop.f32.mrf.mxu0
  %v2182 = vadd.f32 %v2097, %v2181
  %v2183 = vand.u32 %v1536, 4294901760
  %2184 = vmatmul.f32.gmra.mxu0 %v2183
  %v2185 = vpop.f32.mrf.mxu0
  %v2186 = vadd.f32 %v2101, %v2185
  %2187 = vdwg.mxu0
  %v2188 = vld [vmem:[%s4] sm:$0xff]
  %v2189 = vld [vmem:[%s4 + $0x8] sm:$0xff]
  %v2190 = vld [vmem:[%s4 + $0x10] sm:$0xff]
  %v2191 = vld [vmem:[%s4 + $0x18] sm:$0xff]
  %v2192 = vld [vmem:[%s4 + $0x20] sm:$0xff]
  %v2193 = vld [vmem:[%s4 + $0x28] sm:$0xff]
  %v2194 = vld [vmem:[%s4 + $0x30] sm:$0xff]
  %v2195 = vld [vmem:[%s4 + $0x38] sm:$0xff]
  %v2196 = vld [vmem:[%s4 + $0x40] sm:$0xff]
  %v2197 = vld [vmem:[%s4 + $0x48] sm:$0xff]
  %v2198 = vld [vmem:[%s4 + $0x50] sm:$0xff]
  %v2199 = vld [vmem:[%s4 + $0x58] sm:$0xff]
  %v2200 = vld [vmem:[%s4 + $0x60] sm:$0xff]
  %v2201 = vld [vmem:[%s4 + $0x68] sm:$0xff]
  %v2202 = vld [vmem:[%s4 + $0x70] sm:$0xff]
  %v2203 = vld [vmem:[%s4 + $0x78] sm:$0xff]
  %v2205 = vsel %vm45, %v2188, 0
  %v2208 = vsel %vm45, %v2189, 0
  %v2211 = vsel %vm45, %v2190, 0
  %v2214 = vsel %vm45, %v2191, 0
  %v2217 = vsel %vm45, %v2192, 0
  %v2220 = vsel %vm45, %v2193, 0
  %v2223 = vsel %vm45, %v2194, 0
  %v2226 = vsel %vm45, %v2195, 0
  %v2229 = vsel %vm45, %v2196, 0
  %v2232 = vsel %vm45, %v2197, 0
  %v2235 = vsel %vm45, %v2198, 0
  %v2238 = vsel %vm45, %v2199, 0
  %v2241 = vsel %vm45, %v2200, 0
  %v2244 = vsel %vm45, %v2201, 0
  %v2247 = vsel %vm45, %v2202, 0
  %v2250 = vsel %vm45, %v2203, 0
  %2252 = vmatpush.msra.mxu0 0.0
  %2253 = vmatpush.msra.mxu0 0.0
  %2254 = vmatpush.msra.mxu0 0.0
  %2255 = vmatpush.msra.mxu0 0.0
  %2256 = vmatpush.msra.mxu0 0.0
  %2257 = vmatpush.msra.mxu0 0.0
  %2258 = vmatpush.msra.mxu0 0.0
  %2259 = vmatpush.msra.mxu0 0.0
  %2260 = vmatpush.msra.mxu0 0.0
  %2261 = vmatpush.msra.mxu0 0.0
  %2262 = vmatpush.msra.mxu0 0.0
  %2263 = vmatpush.msra.mxu0 0.0
  %v2264 = vand.u32 %v771, 4294901760
  %2265 = vmatpush.msra.mxu0 %v2264
  %v2266 = vand.u32 %v769, 4294901760
  %2267 = vmatpush.msra.mxu0 %v2266
  %v2268 = vand.u32 %v767, 4294901760
  %2269 = vmatpush.msra.mxu0 %v2268
  %v2270 = vand.u32 %v765, 4294901760
  %2271 = vmatpush.msra.mxu0 %v2270
  %v2272 = vand.u32 %v2205, 4294901760
  %v2273 = vsub.f32 %v2205, %v2272
  %v2274 = vand.u32 %v2273, 4294901760
  %v2275 = vsub.f32 %v2273, %v2274
  %v2276 = vand.u32 %v2275, 4294901760
  %2277 = vmatmul.f32.gmra.mxu0 %v2276
  %v2278 = vpop.f32.mrf.mxu0
  %v2279 = vadd.f32 0.0, %v2278
  %v2280 = vand.u32 %v2208, 4294901760
  %v2281 = vsub.f32 %v2208, %v2280
  %v2282 = vand.u32 %v2281, 4294901760
  %v2283 = vsub.f32 %v2281, %v2282
  %v2284 = vand.u32 %v2283, 4294901760
  %2285 = vmatmul.f32.gmra.mxu0 %v2284
  %v2286 = vpop.f32.mrf.mxu0
  %v2287 = vadd.f32 0.0, %v2286
  %v2288 = vand.u32 %v2211, 4294901760
  %v2289 = vsub.f32 %v2211, %v2288
  %v2290 = vand.u32 %v2289, 4294901760
  %v2291 = vsub.f32 %v2289, %v2290
  %v2292 = vand.u32 %v2291, 4294901760
  %2293 = vmatmul.f32.gmra.mxu0 %v2292
  %v2294 = vpop.f32.mrf.mxu0
  %v2295 = vadd.f32 0.0, %v2294
  %v2296 = vand.u32 %v2214, 4294901760
  %v2297 = vsub.f32 %v2214, %v2296
  %v2298 = vand.u32 %v2297, 4294901760
  %v2299 = vsub.f32 %v2297, %v2298
  %v2300 = vand.u32 %v2299, 4294901760
  %2301 = vmatmul.f32.gmra.mxu0 %v2300
  %v2302 = vpop.f32.mrf.mxu0
  %v2303 = vadd.f32 0.0, %v2302
  %v2304 = vand.u32 %v2217, 4294901760
  %v2305 = vsub.f32 %v2217, %v2304
  %v2306 = vand.u32 %v2305, 4294901760
  %v2307 = vsub.f32 %v2305, %v2306
  %v2308 = vand.u32 %v2307, 4294901760
  %2309 = vmatmul.f32.gmra.mxu0 %v2308
  %v2310 = vpop.f32.mrf.mxu0
  %v2311 = vadd.f32 0.0, %v2310
  %v2312 = vand.u32 %v2220, 4294901760
  %v2313 = vsub.f32 %v2220, %v2312
  %v2314 = vand.u32 %v2313, 4294901760
  %v2315 = vsub.f32 %v2313, %v2314
  %v2316 = vand.u32 %v2315, 4294901760
  %2317 = vmatmul.f32.gmra.mxu0 %v2316
  %v2318 = vpop.f32.mrf.mxu0
  %v2319 = vadd.f32 0.0, %v2318
  %v2320 = vand.u32 %v2223, 4294901760
  %v2321 = vsub.f32 %v2223, %v2320
  %v2322 = vand.u32 %v2321, 4294901760
  %v2323 = vsub.f32 %v2321, %v2322
  %v2324 = vand.u32 %v2323, 4294901760
  %2325 = vmatmul.f32.gmra.mxu0 %v2324
  %v2326 = vpop.f32.mrf.mxu0
  %v2327 = vadd.f32 0.0, %v2326
  %v2328 = vand.u32 %v2226, 4294901760
  %v2329 = vsub.f32 %v2226, %v2328
  %v2330 = vand.u32 %v2329, 4294901760
  %v2331 = vsub.f32 %v2329, %v2330
  %v2332 = vand.u32 %v2331, 4294901760
  %2333 = vmatmul.f32.gmra.mxu0 %v2332
  %v2334 = vpop.f32.mrf.mxu0
  %v2335 = vadd.f32 0.0, %v2334
  %v2336 = vand.u32 %v2229, 4294901760
  %v2337 = vsub.f32 %v2229, %v2336
  %v2338 = vand.u32 %v2337, 4294901760
  %v2339 = vsub.f32 %v2337, %v2338
  %v2340 = vand.u32 %v2339, 4294901760
  %2341 = vmatmul.f32.gmra.mxu0 %v2340
  %v2342 = vpop.f32.mrf.mxu0
  %v2343 = vadd.f32 0.0, %v2342
  %v2344 = vand.u32 %v2232, 4294901760
  %v2345 = vsub.f32 %v2232, %v2344
  %v2346 = vand.u32 %v2345, 4294901760
  %v2347 = vsub.f32 %v2345, %v2346
  %v2348 = vand.u32 %v2347, 4294901760
  %2349 = vmatmul.f32.gmra.mxu0 %v2348
  %v2350 = vpop.f32.mrf.mxu0
  %v2351 = vadd.f32 0.0, %v2350
  %v2352 = vand.u32 %v2235, 4294901760
  %v2353 = vsub.f32 %v2235, %v2352
  %v2354 = vand.u32 %v2353, 4294901760
  %v2355 = vsub.f32 %v2353, %v2354
  %v2356 = vand.u32 %v2355, 4294901760
  %2357 = vmatmul.f32.gmra.mxu0 %v2356
  %v2358 = vpop.f32.mrf.mxu0
  %v2359 = vadd.f32 0.0, %v2358
  %v2360 = vand.u32 %v2238, 4294901760
  %v2361 = vsub.f32 %v2238, %v2360
  %v2362 = vand.u32 %v2361, 4294901760
  %v2363 = vsub.f32 %v2361, %v2362
  %v2364 = vand.u32 %v2363, 4294901760
  %2365 = vmatmul.f32.gmra.mxu0 %v2364
  %v2366 = vpop.f32.mrf.mxu0
  %v2367 = vadd.f32 0.0, %v2366
  %v2368 = vand.u32 %v2241, 4294901760
  %v2369 = vsub.f32 %v2241, %v2368
  %v2370 = vand.u32 %v2369, 4294901760
  %v2371 = vsub.f32 %v2369, %v2370
  %v2372 = vand.u32 %v2371, 4294901760
  %2373 = vmatmul.f32.gmra.mxu0 %v2372
  %v2374 = vpop.f32.mrf.mxu0
  %v2375 = vadd.f32 0.0, %v2374
  %v2376 = vand.u32 %v2244, 4294901760
  %v2377 = vsub.f32 %v2244, %v2376
  %v2378 = vand.u32 %v2377, 4294901760
  %v2379 = vsub.f32 %v2377, %v2378
  %v2380 = vand.u32 %v2379, 4294901760
  %2381 = vmatmul.f32.gmra.mxu0 %v2380
  %v2382 = vpop.f32.mrf.mxu0
  %v2383 = vadd.f32 0.0, %v2382
  %v2384 = vand.u32 %v2247, 4294901760
  %v2385 = vsub.f32 %v2247, %v2384
  %v2386 = vand.u32 %v2385, 4294901760
  %v2387 = vsub.f32 %v2385, %v2386
  %v2388 = vand.u32 %v2387, 4294901760
  %2389 = vmatmul.f32.gmra.mxu0 %v2388
  %v2390 = vpop.f32.mrf.mxu0
  %v2391 = vadd.f32 0.0, %v2390
  %v2392 = vand.u32 %v2250, 4294901760
  %v2393 = vsub.f32 %v2250, %v2392
  %v2394 = vand.u32 %v2393, 4294901760
  %v2395 = vsub.f32 %v2393, %v2394
  %v2396 = vand.u32 %v2395, 4294901760
  %2397 = vmatmul.f32.gmra.mxu0 %v2396
  %v2398 = vpop.f32.mrf.mxu0
  %v2399 = vadd.f32 0.0, %v2398
  %2400 = vdwg.mxu0
  %2401 = vmatpush.msra.mxu0 0.0
  %2402 = vmatpush.msra.mxu0 0.0
  %2403 = vmatpush.msra.mxu0 0.0
  %2404 = vmatpush.msra.mxu0 0.0
  %2405 = vmatpush.msra.mxu0 0.0
  %2406 = vmatpush.msra.mxu0 0.0
  %2407 = vmatpush.msra.mxu0 0.0
  %2408 = vmatpush.msra.mxu0 0.0
  %2409 = vmatpush.msra.mxu0 0.0
  %2410 = vmatpush.msra.mxu0 0.0
  %2411 = vmatpush.msra.mxu0 0.0
  %2412 = vmatpush.msra.mxu0 0.0
  %v2413 = vand.u32 %v771, 4294901760
  %v2414 = vsub.f32 %v771, %v2413
  %v2415 = vand.u32 %v2414, 4294901760
  %v2416 = vsub.f32 %v2414, %v2415
  %v2417 = vand.u32 %v2416, 4294901760
  %2418 = vmatpush.msra.mxu0 %v2417
  %v2419 = vand.u32 %v769, 4294901760
  %v2420 = vsub.f32 %v769, %v2419
  %v2421 = vand.u32 %v2420, 4294901760
  %v2422 = vsub.f32 %v2420, %v2421
  %v2423 = vand.u32 %v2422, 4294901760
  %2424 = vmatpush.msra.mxu0 %v2423
  %v2425 = vand.u32 %v767, 4294901760
  %v2426 = vsub.f32 %v767, %v2425
  %v2427 = vand.u32 %v2426, 4294901760
  %v2428 = vsub.f32 %v2426, %v2427
  %v2429 = vand.u32 %v2428, 4294901760
  %2430 = vmatpush.msra.mxu0 %v2429
  %v2431 = vand.u32 %v765, 4294901760
  %v2432 = vsub.f32 %v765, %v2431
  %v2433 = vand.u32 %v2432, 4294901760
  %v2434 = vsub.f32 %v2432, %v2433
  %v2435 = vand.u32 %v2434, 4294901760
  %2436 = vmatpush.msra.mxu0 %v2435
  %v2437 = vand.u32 %v2205, 4294901760
  %2438 = vmatmul.f32.gmra.mxu0 %v2437
  %v2439 = vpop.f32.mrf.mxu0
  %v2440 = vadd.f32 %v2279, %v2439
  %v2441 = vand.u32 %v2208, 4294901760
  %2442 = vmatmul.f32.gmra.mxu0 %v2441
  %v2443 = vpop.f32.mrf.mxu0
  %v2444 = vadd.f32 %v2287, %v2443
  %v2445 = vand.u32 %v2211, 4294901760
  %2446 = vmatmul.f32.gmra.mxu0 %v2445
  %v2447 = vpop.f32.mrf.mxu0
  %v2448 = vadd.f32 %v2295, %v2447
  %v2449 = vand.u32 %v2214, 4294901760
  %2450 = vmatmul.f32.gmra.mxu0 %v2449
  %v2451 = vpop.f32.mrf.mxu0
  %v2452 = vadd.f32 %v2303, %v2451
  %v2453 = vand.u32 %v2217, 4294901760
  %2454 = vmatmul.f32.gmra.mxu0 %v2453
  %v2455 = vpop.f32.mrf.mxu0
  %v2456 = vadd.f32 %v2311, %v2455
  %v2457 = vand.u32 %v2220, 4294901760
  %2458 = vmatmul.f32.gmra.mxu0 %v2457
  %v2459 = vpop.f32.mrf.mxu0
  %v2460 = vadd.f32 %v2319, %v2459
  %v2461 = vand.u32 %v2223, 4294901760
  %2462 = vmatmul.f32.gmra.mxu0 %v2461
  %v2463 = vpop.f32.mrf.mxu0
  %v2464 = vadd.f32 %v2327, %v2463
  %v2465 = vand.u32 %v2226, 4294901760
  %2466 = vmatmul.f32.gmra.mxu0 %v2465
  %v2467 = vpop.f32.mrf.mxu0
  %v2468 = vadd.f32 %v2335, %v2467
  %v2469 = vand.u32 %v2229, 4294901760
  %2470 = vmatmul.f32.gmra.mxu0 %v2469
  %v2471 = vpop.f32.mrf.mxu0
  %v2472 = vadd.f32 %v2343, %v2471
  %v2473 = vand.u32 %v2232, 4294901760
  %2474 = vmatmul.f32.gmra.mxu0 %v2473
  %v2475 = vpop.f32.mrf.mxu0
  %v2476 = vadd.f32 %v2351, %v2475
  %v2477 = vand.u32 %v2235, 4294901760
  %2478 = vmatmul.f32.gmra.mxu0 %v2477
  %v2479 = vpop.f32.mrf.mxu0
  %v2480 = vadd.f32 %v2359, %v2479
  %v2481 = vand.u32 %v2238, 4294901760
  %2482 = vmatmul.f32.gmra.mxu0 %v2481
  %v2483 = vpop.f32.mrf.mxu0
  %v2484 = vadd.f32 %v2367, %v2483
  %v2485 = vand.u32 %v2241, 4294901760
  %2486 = vmatmul.f32.gmra.mxu0 %v2485
  %v2487 = vpop.f32.mrf.mxu0
  %v2488 = vadd.f32 %v2375, %v2487
  %v2489 = vand.u32 %v2244, 4294901760
  %2490 = vmatmul.f32.gmra.mxu0 %v2489
  %v2491 = vpop.f32.mrf.mxu0
  %v2492 = vadd.f32 %v2383, %v2491
  %v2493 = vand.u32 %v2247, 4294901760
  %2494 = vmatmul.f32.gmra.mxu0 %v2493
  %v2495 = vpop.f32.mrf.mxu0
  %v2496 = vadd.f32 %v2391, %v2495
  %v2497 = vand.u32 %v2250, 4294901760
  %2498 = vmatmul.f32.gmra.mxu0 %v2497
  %v2499 = vpop.f32.mrf.mxu0
  %v2500 = vadd.f32 %v2399, %v2499
  %2501 = vdwg.mxu0
  %2502 = vmatpush.msra.mxu0 0.0
  %2503 = vmatpush.msra.mxu0 0.0
  %2504 = vmatpush.msra.mxu0 0.0
  %2505 = vmatpush.msra.mxu0 0.0
  %2506 = vmatpush.msra.mxu0 0.0
  %2507 = vmatpush.msra.mxu0 0.0
  %2508 = vmatpush.msra.mxu0 0.0
  %2509 = vmatpush.msra.mxu0 0.0
  %2510 = vmatpush.msra.mxu0 0.0
  %2511 = vmatpush.msra.mxu0 0.0
  %2512 = vmatpush.msra.mxu0 0.0
  %2513 = vmatpush.msra.mxu0 0.0
  %v2514 = vand.u32 %v771, 4294901760
  %v2515 = vsub.f32 %v771, %v2514
  %2516 = vmatpush.msra.mxu0 %v2515
  %v2517 = vand.u32 %v769, 4294901760
  %v2518 = vsub.f32 %v769, %v2517
  %2519 = vmatpush.msra.mxu0 %v2518
  %v2520 = vand.u32 %v767, 4294901760
  %v2521 = vsub.f32 %v767, %v2520
  %2522 = vmatpush.msra.mxu0 %v2521
  %v2523 = vand.u32 %v765, 4294901760
  %v2524 = vsub.f32 %v765, %v2523
  %2525 = vmatpush.msra.mxu0 %v2524
  %v2526 = vand.u32 %v2205, 4294901760
  %v2527 = vsub.f32 %v2205, %v2526
  %2528 = vmatmul.f32.gmra.mxu0 %v2527
  %v2529 = vpop.f32.mrf.mxu0
  %v2530 = vadd.f32 %v2440, %v2529
  %v2531 = vand.u32 %v2208, 4294901760
  %v2532 = vsub.f32 %v2208, %v2531
  %2533 = vmatmul.f32.gmra.mxu0 %v2532
  %v2534 = vpop.f32.mrf.mxu0
  %v2535 = vadd.f32 %v2444, %v2534
  %v2536 = vand.u32 %v2211, 4294901760
  %v2537 = vsub.f32 %v2211, %v2536
  %2538 = vmatmul.f32.gmra.mxu0 %v2537
  %v2539 = vpop.f32.mrf.mxu0
  %v2540 = vadd.f32 %v2448, %v2539
  %v2541 = vand.u32 %v2214, 4294901760
  %v2542 = vsub.f32 %v2214, %v2541
  %2543 = vmatmul.f32.gmra.mxu0 %v2542
  %v2544 = vpop.f32.mrf.mxu0
  %v2545 = vadd.f32 %v2452, %v2544
  %v2546 = vand.u32 %v2217, 4294901760
  %v2547 = vsub.f32 %v2217, %v2546
  %2548 = vmatmul.f32.gmra.mxu0 %v2547
  %v2549 = vpop.f32.mrf.mxu0
  %v2550 = vadd.f32 %v2456, %v2549
  %v2551 = vand.u32 %v2220, 4294901760
  %v2552 = vsub.f32 %v2220, %v2551
  %2553 = vmatmul.f32.gmra.mxu0 %v2552
  %v2554 = vpop.f32.mrf.mxu0
  %v2555 = vadd.f32 %v2460, %v2554
  %v2556 = vand.u32 %v2223, 4294901760
  %v2557 = vsub.f32 %v2223, %v2556
  %2558 = vmatmul.f32.gmra.mxu0 %v2557
  %v2559 = vpop.f32.mrf.mxu0
  %v2560 = vadd.f32 %v2464, %v2559
  %v2561 = vand.u32 %v2226, 4294901760
  %v2562 = vsub.f32 %v2226, %v2561
  %2563 = vmatmul.f32.gmra.mxu0 %v2562
  %v2564 = vpop.f32.mrf.mxu0
  %v2565 = vadd.f32 %v2468, %v2564
  %v2566 = vand.u32 %v2229, 4294901760
  %v2567 = vsub.f32 %v2229, %v2566
  %2568 = vmatmul.f32.gmra.mxu0 %v2567
  %v2569 = vpop.f32.mrf.mxu0
  %v2570 = vadd.f32 %v2472, %v2569
  %v2571 = vand.u32 %v2232, 4294901760
  %v2572 = vsub.f32 %v2232, %v2571
  %2573 = vmatmul.f32.gmra.mxu0 %v2572
  %v2574 = vpop.f32.mrf.mxu0
  %v2575 = vadd.f32 %v2476, %v2574
  %v2576 = vand.u32 %v2235, 4294901760
  %v2577 = vsub.f32 %v2235, %v2576
  %2578 = vmatmul.f32.gmra.mxu0 %v2577
  %v2579 = vpop.f32.mrf.mxu0
  %v2580 = vadd.f32 %v2480, %v2579
  %v2581 = vand.u32 %v2238, 4294901760
  %v2582 = vsub.f32 %v2238, %v2581
  %2583 = vmatmul.f32.gmra.mxu0 %v2582
  %v2584 = vpop.f32.mrf.mxu0
  %v2585 = vadd.f32 %v2484, %v2584
  %v2586 = vand.u32 %v2241, 4294901760
  %v2587 = vsub.f32 %v2241, %v2586
  %2588 = vmatmul.f32.gmra.mxu0 %v2587
  %v2589 = vpop.f32.mrf.mxu0
  %v2590 = vadd.f32 %v2488, %v2589
  %v2591 = vand.u32 %v2244, 4294901760
  %v2592 = vsub.f32 %v2244, %v2591
  %2593 = vmatmul.f32.gmra.mxu0 %v2592
  %v2594 = vpop.f32.mrf.mxu0
  %v2595 = vadd.f32 %v2492, %v2594
  %v2596 = vand.u32 %v2247, 4294901760
  %v2597 = vsub.f32 %v2247, %v2596
  %2598 = vmatmul.f32.gmra.mxu0 %v2597
  %v2599 = vpop.f32.mrf.mxu0
  %v2600 = vadd.f32 %v2496, %v2599
  %v2601 = vand.u32 %v2250, 4294901760
  %v2602 = vsub.f32 %v2250, %v2601
  %2603 = vmatmul.f32.gmra.mxu0 %v2602
  %v2604 = vpop.f32.mrf.mxu0
  %v2605 = vadd.f32 %v2500, %v2604
  %2606 = vdwg.mxu0
  %2607 = vmatpush.msra.mxu0 0.0
  %2608 = vmatpush.msra.mxu0 0.0
  %2609 = vmatpush.msra.mxu0 0.0
  %2610 = vmatpush.msra.mxu0 0.0
  %2611 = vmatpush.msra.mxu0 0.0
  %2612 = vmatpush.msra.mxu0 0.0
  %2613 = vmatpush.msra.mxu0 0.0
  %2614 = vmatpush.msra.mxu0 0.0
  %2615 = vmatpush.msra.mxu0 0.0
  %2616 = vmatpush.msra.mxu0 0.0
  %2617 = vmatpush.msra.mxu0 0.0
  %2618 = vmatpush.msra.mxu0 0.0
  %v2619 = vand.u32 %v771, 4294901760
  %2620 = vmatpush.msra.mxu0 %v2619
  %v2621 = vand.u32 %v769, 4294901760
  %2622 = vmatpush.msra.mxu0 %v2621
  %v2623 = vand.u32 %v767, 4294901760
  %2624 = vmatpush.msra.mxu0 %v2623
  %v2625 = vand.u32 %v765, 4294901760
  %2626 = vmatpush.msra.mxu0 %v2625
  %v2627 = vand.u32 %v2205, 4294901760
  %v2628 = vsub.f32 %v2205, %v2627
  %v2629 = vand.u32 %v2628, 4294901760
  %2630 = vmatmul.f32.gmra.mxu0 %v2629
  %v2631 = vpop.f32.mrf.mxu0
  %v2632 = vadd.f32 %v2530, %v2631
  %v2633 = vand.u32 %v2208, 4294901760
  %v2634 = vsub.f32 %v2208, %v2633
  %v2635 = vand.u32 %v2634, 4294901760
  %2636 = vmatmul.f32.gmra.mxu0 %v2635
  %v2637 = vpop.f32.mrf.mxu0
  %v2638 = vadd.f32 %v2535, %v2637
  %v2639 = vand.u32 %v2211, 4294901760
  %v2640 = vsub.f32 %v2211, %v2639
  %v2641 = vand.u32 %v2640, 4294901760
  %2642 = vmatmul.f32.gmra.mxu0 %v2641
  %v2643 = vpop.f32.mrf.mxu0
  %v2644 = vadd.f32 %v2540, %v2643
  %v2645 = vand.u32 %v2214, 4294901760
  %v2646 = vsub.f32 %v2214, %v2645
  %v2647 = vand.u32 %v2646, 4294901760
  %2648 = vmatmul.f32.gmra.mxu0 %v2647
  %v2649 = vpop.f32.mrf.mxu0
  %v2650 = vadd.f32 %v2545, %v2649
  %v2651 = vand.u32 %v2217, 4294901760
  %v2652 = vsub.f32 %v2217, %v2651
  %v2653 = vand.u32 %v2652, 4294901760
  %2654 = vmatmul.f32.gmra.mxu0 %v2653
  %v2655 = vpop.f32.mrf.mxu0
  %v2656 = vadd.f32 %v2550, %v2655
  %v2657 = vand.u32 %v2220, 4294901760
  %v2658 = vsub.f32 %v2220, %v2657
  %v2659 = vand.u32 %v2658, 4294901760
  %2660 = vmatmul.f32.gmra.mxu0 %v2659
  %v2661 = vpop.f32.mrf.mxu0
  %v2662 = vadd.f32 %v2555, %v2661
  %v2663 = vand.u32 %v2223, 4294901760
  %v2664 = vsub.f32 %v2223, %v2663
  %v2665 = vand.u32 %v2664, 4294901760
  %2666 = vmatmul.f32.gmra.mxu0 %v2665
  %v2667 = vpop.f32.mrf.mxu0
  %v2668 = vadd.f32 %v2560, %v2667
  %v2669 = vand.u32 %v2226, 4294901760
  %v2670 = vsub.f32 %v2226, %v2669
  %v2671 = vand.u32 %v2670, 4294901760
  %2672 = vmatmul.f32.gmra.mxu0 %v2671
  %v2673 = vpop.f32.mrf.mxu0
  %v2674 = vadd.f32 %v2565, %v2673
  %v2675 = vand.u32 %v2229, 4294901760
  %v2676 = vsub.f32 %v2229, %v2675
  %v2677 = vand.u32 %v2676, 4294901760
  %2678 = vmatmul.f32.gmra.mxu0 %v2677
  %v2679 = vpop.f32.mrf.mxu0
  %v2680 = vadd.f32 %v2570, %v2679
  %v2681 = vand.u32 %v2232, 4294901760
  %v2682 = vsub.f32 %v2232, %v2681
  %v2683 = vand.u32 %v2682, 4294901760
  %2684 = vmatmul.f32.gmra.mxu0 %v2683
  %v2685 = vpop.f32.mrf.mxu0
  %v2686 = vadd.f32 %v2575, %v2685
  %v2687 = vand.u32 %v2235, 4294901760
  %v2688 = vsub.f32 %v2235, %v2687
  %v2689 = vand.u32 %v2688, 4294901760
  %2690 = vmatmul.f32.gmra.mxu0 %v2689
  %v2691 = vpop.f32.mrf.mxu0
  %v2692 = vadd.f32 %v2580, %v2691
  %v2693 = vand.u32 %v2238, 4294901760
  %v2694 = vsub.f32 %v2238, %v2693
  %v2695 = vand.u32 %v2694, 4294901760
  %2696 = vmatmul.f32.gmra.mxu0 %v2695
  %v2697 = vpop.f32.mrf.mxu0
  %v2698 = vadd.f32 %v2585, %v2697
  %v2699 = vand.u32 %v2241, 4294901760
  %v2700 = vsub.f32 %v2241, %v2699
  %v2701 = vand.u32 %v2700, 4294901760
  %2702 = vmatmul.f32.gmra.mxu0 %v2701
  %v2703 = vpop.f32.mrf.mxu0
  %v2704 = vadd.f32 %v2590, %v2703
  %v2705 = vand.u32 %v2244, 4294901760
  %v2706 = vsub.f32 %v2244, %v2705
  %v2707 = vand.u32 %v2706, 4294901760
  %2708 = vmatmul.f32.gmra.mxu0 %v2707
  %v2709 = vpop.f32.mrf.mxu0
  %v2710 = vadd.f32 %v2595, %v2709
  %v2711 = vand.u32 %v2247, 4294901760
  %v2712 = vsub.f32 %v2247, %v2711
  %v2713 = vand.u32 %v2712, 4294901760
  %2714 = vmatmul.f32.gmra.mxu0 %v2713
  %v2715 = vpop.f32.mrf.mxu0
  %v2716 = vadd.f32 %v2600, %v2715
  %v2717 = vand.u32 %v2250, 4294901760
  %v2718 = vsub.f32 %v2250, %v2717
  %v2719 = vand.u32 %v2718, 4294901760
  %2720 = vmatmul.f32.gmra.mxu0 %v2719
  %v2721 = vpop.f32.mrf.mxu0
  %v2722 = vadd.f32 %v2605, %v2721
  %2723 = vdwg.mxu0
  %2724 = vmatpush.msra.mxu0 0.0
  %2725 = vmatpush.msra.mxu0 0.0
  %2726 = vmatpush.msra.mxu0 0.0
  %2727 = vmatpush.msra.mxu0 0.0
  %2728 = vmatpush.msra.mxu0 0.0
  %2729 = vmatpush.msra.mxu0 0.0
  %2730 = vmatpush.msra.mxu0 0.0
  %2731 = vmatpush.msra.mxu0 0.0
  %2732 = vmatpush.msra.mxu0 0.0
  %2733 = vmatpush.msra.mxu0 0.0
  %2734 = vmatpush.msra.mxu0 0.0
  %2735 = vmatpush.msra.mxu0 0.0
  %v2736 = vand.u32 %v771, 4294901760
  %v2737 = vsub.f32 %v771, %v2736
  %v2738 = vand.u32 %v2737, 4294901760
  %2739 = vmatpush.msra.mxu0 %v2738
  %v2740 = vand.u32 %v769, 4294901760
  %v2741 = vsub.f32 %v769, %v2740
  %v2742 = vand.u32 %v2741, 4294901760
  %2743 = vmatpush.msra.mxu0 %v2742
  %v2744 = vand.u32 %v767, 4294901760
  %v2745 = vsub.f32 %v767, %v2744
  %v2746 = vand.u32 %v2745, 4294901760
  %2747 = vmatpush.msra.mxu0 %v2746
  %v2748 = vand.u32 %v765, 4294901760
  %v2749 = vsub.f32 %v765, %v2748
  %v2750 = vand.u32 %v2749, 4294901760
  %2751 = vmatpush.msra.mxu0 %v2750
  %v2752 = vand.u32 %v2205, 4294901760
  %2753 = vmatmul.f32.gmra.mxu0 %v2752
  %v2754 = vpop.f32.mrf.mxu0
  %v2755 = vadd.f32 %v2632, %v2754
  %v2756 = vand.u32 %v2208, 4294901760
  %2757 = vmatmul.f32.gmra.mxu0 %v2756
  %v2758 = vpop.f32.mrf.mxu0
  %v2759 = vadd.f32 %v2638, %v2758
  %v2760 = vand.u32 %v2211, 4294901760
  %2761 = vmatmul.f32.gmra.mxu0 %v2760
  %v2762 = vpop.f32.mrf.mxu0
  %v2763 = vadd.f32 %v2644, %v2762
  %v2764 = vand.u32 %v2214, 4294901760
  %2765 = vmatmul.f32.gmra.mxu0 %v2764
  %v2766 = vpop.f32.mrf.mxu0
  %v2767 = vadd.f32 %v2650, %v2766
  %v2768 = vand.u32 %v2217, 4294901760
  %2769 = vmatmul.f32.gmra.mxu0 %v2768
  %v2770 = vpop.f32.mrf.mxu0
  %v2771 = vadd.f32 %v2656, %v2770
  %v2772 = vand.u32 %v2220, 4294901760
  %2773 = vmatmul.f32.gmra.mxu0 %v2772
  %v2774 = vpop.f32.mrf.mxu0
  %v2775 = vadd.f32 %v2662, %v2774
  %v2776 = vand.u32 %v2223, 4294901760
  %2777 = vmatmul.f32.gmra.mxu0 %v2776
  %v2778 = vpop.f32.mrf.mxu0
  %v2779 = vadd.f32 %v2668, %v2778
  %v2780 = vand.u32 %v2226, 4294901760
  %2781 = vmatmul.f32.gmra.mxu0 %v2780
  %v2782 = vpop.f32.mrf.mxu0
  %v2783 = vadd.f32 %v2674, %v2782
  %v2784 = vand.u32 %v2229, 4294901760
  %2785 = vmatmul.f32.gmra.mxu0 %v2784
  %v2786 = vpop.f32.mrf.mxu0
  %v2787 = vadd.f32 %v2680, %v2786
  %v2788 = vand.u32 %v2232, 4294901760
  %2789 = vmatmul.f32.gmra.mxu0 %v2788
  %v2790 = vpop.f32.mrf.mxu0
  %v2791 = vadd.f32 %v2686, %v2790
  %v2792 = vand.u32 %v2235, 4294901760
  %2793 = vmatmul.f32.gmra.mxu0 %v2792
  %v2794 = vpop.f32.mrf.mxu0
  %v2795 = vadd.f32 %v2692, %v2794
  %v2796 = vand.u32 %v2238, 4294901760
  %2797 = vmatmul.f32.gmra.mxu0 %v2796
  %v2798 = vpop.f32.mrf.mxu0
  %v2799 = vadd.f32 %v2698, %v2798
  %v2800 = vand.u32 %v2241, 4294901760
  %2801 = vmatmul.f32.gmra.mxu0 %v2800
  %v2802 = vpop.f32.mrf.mxu0
  %v2803 = vadd.f32 %v2704, %v2802
  %v2804 = vand.u32 %v2244, 4294901760
  %2805 = vmatmul.f32.gmra.mxu0 %v2804
  %v2806 = vpop.f32.mrf.mxu0
  %v2807 = vadd.f32 %v2710, %v2806
  %v2808 = vand.u32 %v2247, 4294901760
  %2809 = vmatmul.f32.gmra.mxu0 %v2808
  %v2810 = vpop.f32.mrf.mxu0
  %v2811 = vadd.f32 %v2716, %v2810
  %v2812 = vand.u32 %v2250, 4294901760
  %2813 = vmatmul.f32.gmra.mxu0 %v2812
  %v2814 = vpop.f32.mrf.mxu0
  %v2815 = vadd.f32 %v2722, %v2814
  %2816 = vdwg.mxu0
  %2817 = vmatpush.msra.mxu0 0.0
  %2818 = vmatpush.msra.mxu0 0.0
  %2819 = vmatpush.msra.mxu0 0.0
  %2820 = vmatpush.msra.mxu0 0.0
  %2821 = vmatpush.msra.mxu0 0.0
  %2822 = vmatpush.msra.mxu0 0.0
  %2823 = vmatpush.msra.mxu0 0.0
  %2824 = vmatpush.msra.mxu0 0.0
  %2825 = vmatpush.msra.mxu0 0.0
  %2826 = vmatpush.msra.mxu0 0.0
  %2827 = vmatpush.msra.mxu0 0.0
  %2828 = vmatpush.msra.mxu0 0.0
  %v2829 = vand.u32 %v771, 4294901760
  %2830 = vmatpush.msra.mxu0 %v2829
  %v2831 = vand.u32 %v769, 4294901760
  %2832 = vmatpush.msra.mxu0 %v2831
  %v2833 = vand.u32 %v767, 4294901760
  %2834 = vmatpush.msra.mxu0 %v2833
  %v2835 = vand.u32 %v765, 4294901760
  %2836 = vmatpush.msra.mxu0 %v2835
  %v2837 = vand.u32 %v2205, 4294901760
  %2838 = vmatmul.f32.gmra.mxu0 %v2837
  %v2839 = vpop.f32.mrf.mxu0
  %v2840 = vadd.f32 %v2755, %v2839
  %v2841 = vand.u32 %v2208, 4294901760
  %2842 = vmatmul.f32.gmra.mxu0 %v2841
  %v2843 = vpop.f32.mrf.mxu0
  %v2844 = vadd.f32 %v2759, %v2843
  %v2845 = vand.u32 %v2211, 4294901760
  %2846 = vmatmul.f32.gmra.mxu0 %v2845
  %v2847 = vpop.f32.mrf.mxu0
  %v2848 = vadd.f32 %v2763, %v2847
  %v2849 = vand.u32 %v2214, 4294901760
  %2850 = vmatmul.f32.gmra.mxu0 %v2849
  %v2851 = vpop.f32.mrf.mxu0
  %v2852 = vadd.f32 %v2767, %v2851
  %v2853 = vand.u32 %v2217, 4294901760
  %2854 = vmatmul.f32.gmra.mxu0 %v2853
  %v2855 = vpop.f32.mrf.mxu0
  %v2856 = vadd.f32 %v2771, %v2855
  %v2857 = vand.u32 %v2220, 4294901760
  %2858 = vmatmul.f32.gmra.mxu0 %v2857
  %v2859 = vpop.f32.mrf.mxu0
  %v2860 = vadd.f32 %v2775, %v2859
  %v2861 = vand.u32 %v2223, 4294901760
  %2862 = vmatmul.f32.gmra.mxu0 %v2861
  %v2863 = vpop.f32.mrf.mxu0
  %v2864 = vadd.f32 %v2779, %v2863
  %v2865 = vand.u32 %v2226, 4294901760
  %2866 = vmatmul.f32.gmra.mxu0 %v2865
  %v2867 = vpop.f32.mrf.mxu0
  %v2868 = vadd.f32 %v2783, %v2867
  %v2869 = vand.u32 %v2229, 4294901760
  %2870 = vmatmul.f32.gmra.mxu0 %v2869
  %v2871 = vpop.f32.mrf.mxu0
  %v2872 = vadd.f32 %v2787, %v2871
  %v2873 = vand.u32 %v2232, 4294901760
  %2874 = vmatmul.f32.gmra.mxu0 %v2873
  %v2875 = vpop.f32.mrf.mxu0
  %v2876 = vadd.f32 %v2791, %v2875
  %v2877 = vand.u32 %v2235, 4294901760
  %2878 = vmatmul.f32.gmra.mxu0 %v2877
  %v2879 = vpop.f32.mrf.mxu0
  %v2880 = vadd.f32 %v2795, %v2879
  %v2881 = vand.u32 %v2238, 4294901760
  %2882 = vmatmul.f32.gmra.mxu0 %v2881
  %v2883 = vpop.f32.mrf.mxu0
  %v2884 = vadd.f32 %v2799, %v2883
  %v2885 = vand.u32 %v2241, 4294901760
  %2886 = vmatmul.f32.gmra.mxu0 %v2885
  %v2887 = vpop.f32.mrf.mxu0
  %v2888 = vadd.f32 %v2803, %v2887
  %v2889 = vand.u32 %v2244, 4294901760
  %2890 = vmatmul.f32.gmra.mxu0 %v2889
  %v2891 = vpop.f32.mrf.mxu0
  %v2892 = vadd.f32 %v2807, %v2891
  %v2893 = vand.u32 %v2247, 4294901760
  %2894 = vmatmul.f32.gmra.mxu0 %v2893
  %v2895 = vpop.f32.mrf.mxu0
  %v2896 = vadd.f32 %v2811, %v2895
  %v2897 = vand.u32 %v2250, 4294901760
  %2898 = vmatmul.f32.gmra.mxu0 %v2897
  %v2899 = vpop.f32.mrf.mxu0
  %v2900 = vadd.f32 %v2815, %v2899
  %2901 = vdwg.mxu0
  %2918 = vrot.lane.b32.xlu0 %v1412, 1
  %v2919 = vpop.permute.xlu0 %2918
  %2920 = vrot.lane.b32.xlu0 %v1416, 1
  %v2921 = vpop.permute.xlu0 %2920
  %2922 = vrot.lane.b32.xlu0 %v1420, 1
  %v2923 = vpop.permute.xlu0 %2922
  %2924 = vrot.lane.b32.xlu0 %v1424, 1
  %v2925 = vpop.permute.xlu0 %2924
  %2926 = vrot.lane.b32.xlu0 %v1428, 1
  %v2927 = vpop.permute.xlu0 %2926
  %2928 = vrot.lane.b32.xlu0 %v1432, 1
  %v2929 = vpop.permute.xlu0 %2928
  %2930 = vrot.lane.b32.xlu0 %v1436, 1
  %v2931 = vpop.permute.xlu0 %2930
  %2932 = vrot.lane.b32.xlu0 %v1440, 1
  %v2933 = vpop.permute.xlu0 %2932
  %2934 = vrot.lane.b32.xlu0 %v1444, 1
  %v2935 = vpop.permute.xlu0 %2934
  %2936 = vrot.lane.b32.xlu0 %v1448, 1
  %v2937 = vpop.permute.xlu0 %2936
  %2938 = vrot.lane.b32.xlu0 %v1452, 1
  %v2939 = vpop.permute.xlu0 %2938
  %2940 = vrot.lane.b32.xlu0 %v1456, 1
  %v2941 = vpop.permute.xlu0 %2940
  %2942 = vrot.lane.b32.xlu0 %v1460, 1
  %v2943 = vpop.permute.xlu0 %2942
  %2944 = vrot.lane.b32.xlu0 %v1464, 1
  %v2945 = vpop.permute.xlu0 %2944
  %2946 = vrot.lane.b32.xlu0 %v1468, 1
  %v2947 = vpop.permute.xlu0 %2946
  %2948 = vrot.lane.b32.xlu0 %v1472, 1
  %v2949 = vpop.permute.xlu0 %2948
  %2982 = vrot.lane.b32.xlu0 %v2126, 2
  %v2983 = vpop.permute.xlu0 %2982
  %2984 = vrot.lane.b32.xlu0 %v2130, 2
  %v2985 = vpop.permute.xlu0 %2984
  %2986 = vrot.lane.b32.xlu0 %v2134, 2
  %v2987 = vpop.permute.xlu0 %2986
  %2988 = vrot.lane.b32.xlu0 %v2138, 2
  %v2989 = vpop.permute.xlu0 %2988
  %2990 = vrot.lane.b32.xlu0 %v2142, 2
  %v2991 = vpop.permute.xlu0 %2990
  %2992 = vrot.lane.b32.xlu0 %v2146, 2
  %v2993 = vpop.permute.xlu0 %2992
  %2994 = vrot.lane.b32.xlu0 %v2150, 2
  %v2995 = vpop.permute.xlu0 %2994
  %2996 = vrot.lane.b32.xlu0 %v2154, 2
  %v2997 = vpop.permute.xlu0 %2996
  %2998 = vrot.lane.b32.xlu0 %v2158, 2
  %v2999 = vpop.permute.xlu0 %2998
  %3000 = vrot.lane.b32.xlu0 %v2162, 2
  %v3001 = vpop.permute.xlu0 %3000
  %3002 = vrot.lane.b32.xlu0 %v2166, 2
  %v3003 = vpop.permute.xlu0 %3002
  %3004 = vrot.lane.b32.xlu0 %v2170, 2
  %v3005 = vpop.permute.xlu0 %3004
  %3006 = vrot.lane.b32.xlu0 %v2174, 2
  %v3007 = vpop.permute.xlu0 %3006
  %3008 = vrot.lane.b32.xlu0 %v2178, 2
  %v3009 = vpop.permute.xlu0 %3008
  %3010 = vrot.lane.b32.xlu0 %v2182, 2
  %v3011 = vpop.permute.xlu0 %3010
  %3012 = vrot.lane.b32.xlu0 %v2186, 2
  %v3013 = vpop.permute.xlu0 %3012
  %3046 = vrot.lane.b32.xlu0 %v2840, 3
  %v3047 = vpop.permute.xlu0 %3046
  %3048 = vrot.lane.b32.xlu0 %v2844, 3
  %v3049 = vpop.permute.xlu0 %3048
  %3050 = vrot.lane.b32.xlu0 %v2848, 3
  %v3051 = vpop.permute.xlu0 %3050
  %3052 = vrot.lane.b32.xlu0 %v2852, 3
  %v3053 = vpop.permute.xlu0 %3052
  %3054 = vrot.lane.b32.xlu0 %v2856, 3
  %v3055 = vpop.permute.xlu0 %3054
  %3056 = vrot.lane.b32.xlu0 %v2860, 3
  %v3057 = vpop.permute.xlu0 %3056
  %3058 = vrot.lane.b32.xlu0 %v2864, 3
  %v3059 = vpop.permute.xlu0 %3058
  %3060 = vrot.lane.b32.xlu0 %v2868, 3
  %v3061 = vpop.permute.xlu0 %3060
  %3062 = vrot.lane.b32.xlu0 %v2872, 3
  %v3063 = vpop.permute.xlu0 %3062
  %3064 = vrot.lane.b32.xlu0 %v2876, 3
  %v3065 = vpop.permute.xlu0 %3064
  %3066 = vrot.lane.b32.xlu0 %v2880, 3
  %v3067 = vpop.permute.xlu0 %3066
  %3068 = vrot.lane.b32.xlu0 %v2884, 3
  %v3069 = vpop.permute.xlu0 %3068
  %3070 = vrot.lane.b32.xlu0 %v2888, 3
  %v3071 = vpop.permute.xlu0 %3070
  %3072 = vrot.lane.b32.xlu0 %v2892, 3
  %v3073 = vpop.permute.xlu0 %3072
  %3074 = vrot.lane.b32.xlu0 %v2896, 3
  %v3075 = vpop.permute.xlu0 %3074
  %3076 = vrot.lane.b32.xlu0 %v2900, 3
  %v3077 = vpop.permute.xlu0 %3076
  %vm3094 = vcmask 7168
  %v3095 = vsel %vm3094, %v682, %v2919
  %v3096 = vsel %vm3094, %v686, %v2921
  %v3097 = vsel %vm3094, %v690, %v2923
  %v3098 = vsel %vm3094, %v694, %v2925
  %v3099 = vsel %vm3094, %v698, %v2927
  %v3100 = vsel %vm3094, %v702, %v2929
  %v3101 = vsel %vm3094, %v706, %v2931
  %v3102 = vsel %vm3094, %v710, %v2933
  %v3103 = vsel %vm3094, %v714, %v2935
  %v3104 = vsel %vm3094, %v718, %v2937
  %v3105 = vsel %vm3094, %v722, %v2939
  %v3106 = vsel %vm3094, %v726, %v2941
  %v3107 = vsel %vm3094, %v730, %v2943
  %v3108 = vsel %vm3094, %v734, %v2945
  %v3109 = vsel %vm3094, %v738, %v2947
  %v3110 = vsel %vm3094, %v742, %v2949
  %vm3111 = vcmask 15360
  %v3112 = vsel %vm3111, %v3095, %v2983
  %v3113 = vsel %vm3111, %v3096, %v2985
  %v3114 = vsel %vm3111, %v3097, %v2987
  %v3115 = vsel %vm3111, %v3098, %v2989
  %v3116 = vsel %vm3111, %v3099, %v2991
  %v3117 = vsel %vm3111, %v3100, %v2993
  %v3118 = vsel %vm3111, %v3101, %v2995
  %v3119 = vsel %vm3111, %v3102, %v2997
  %v3120 = vsel %vm3111, %v3103, %v2999
  %v3121 = vsel %vm3111, %v3104, %v3001
  %v3122 = vsel %vm3111, %v3105, %v3003
  %v3123 = vsel %vm3111, %v3106, %v3005
  %v3124 = vsel %vm3111, %v3107, %v3007
  %v3125 = vsel %vm3111, %v3108, %v3009
  %v3126 = vsel %vm3111, %v3109, %v3011
  %v3127 = vsel %vm3111, %v3110, %v3013
  %vm3128 = vcmask 23552
  %v3129 = vsel %vm3128, %v3112, %v3047
  %v3130 = vsel %vm3128, %v3113, %v3049
  %v3131 = vsel %vm3128, %v3114, %v3051
  %v3132 = vsel %vm3128, %v3115, %v3053
  %v3133 = vsel %vm3128, %v3116, %v3055
  %v3134 = vsel %vm3128, %v3117, %v3057
  %v3135 = vsel %vm3128, %v3118, %v3059
  %v3136 = vsel %vm3128, %v3119, %v3061
  %v3137 = vsel %vm3128, %v3120, %v3063
  %v3138 = vsel %vm3128, %v3121, %v3065
  %v3139 = vsel %vm3128, %v3122, %v3067
  %v3140 = vsel %vm3128, %v3123, %v3069
  %v3141 = vsel %vm3128, %v3124, %v3071
  %v3142 = vsel %vm3128, %v3125, %v3073
  %v3143 = vsel %vm3128, %v3126, %v3075
  %v3144 = vsel %vm3128, %v3127, %v3077
  %v3145 = vstv %s24
  %v3146 = vadd.f32 %v3129, %v3145
  %v3147 = vadd.f32 %v3130, %v3145
  %v3148 = vadd.f32 %v3131, %v3145
  %v3149 = vadd.f32 %v3132, %v3145
  %v3150 = vadd.f32 %v3133, %v3145
  %v3151 = vadd.f32 %v3134, %v3145
  %v3152 = vadd.f32 %v3135, %v3145
  %v3153 = vadd.f32 %v3136, %v3145
  %v3154 = vadd.f32 %v3137, %v3145
  %v3155 = vadd.f32 %v3138, %v3145
  %v3156 = vadd.f32 %v3139, %v3145
  %v3157 = vadd.f32 %v3140, %v3145
  %v3158 = vadd.f32 %v3141, %v3145
  %v3159 = vadd.f32 %v3142, %v3145
  %v3160 = vadd.f32 %v3143, %v3145
  %v3161 = vadd.f32 %v3144, %v3145
  %vm3162 = vcmask 31744
  %3163 = vst.msk [vmem:[%s6] sm:$0xff] %vm3162, %v3146
  %3164 = vst.msk [vmem:[%s6 + $0x8] sm:$0xff] %vm3162, %v3147
  %3165 = vst.msk [vmem:[%s6 + $0x10] sm:$0xff] %vm3162, %v3148
  %3166 = vst.msk [vmem:[%s6 + $0x18] sm:$0xff] %vm3162, %v3149
  %3167 = vst.msk [vmem:[%s6 + $0x20] sm:$0xff] %vm3162, %v3150
  %3168 = vst.msk [vmem:[%s6 + $0x28] sm:$0xff] %vm3162, %v3151
  %3169 = vst.msk [vmem:[%s6 + $0x30] sm:$0xff] %vm3162, %v3152
  %3170 = vst.msk [vmem:[%s6 + $0x38] sm:$0xff] %vm3162, %v3153
  %3171 = vst.msk [vmem:[%s6 + $0x40] sm:$0xff] %vm3162, %v3154
  %3172 = vst.msk [vmem:[%s6 + $0x48] sm:$0xff] %vm3162, %v3155
  %3173 = vst.msk [vmem:[%s6 + $0x50] sm:$0xff] %vm3162, %v3156
  %3174 = vst.msk [vmem:[%s6 + $0x58] sm:$0xff] %vm3162, %v3157
  %3175 = vst.msk [vmem:[%s6 + $0x60] sm:$0xff] %vm3162, %v3158
  %3176 = vst.msk [vmem:[%s6 + $0x68] sm:$0xff] %vm3162, %v3159
  %3177 = vst.msk [vmem:[%s6 + $0x70] sm:$0xff] %vm3162, %v3160
  %3178 = vst.msk [vmem:[%s6 + $0x78] sm:$0xff] %vm3162, %v3161
  // Predicated region
  $region26: #{tpu_custom_call.1} parent=0 // pred_check
    _
  $region27: #{tpu_custom_call.1} parent=0 // pred_check_branch
    %3180 = sbr.rel (0) target = $region29
  $region28: #{tpu_custom_call.1} parent=0 // pred_region
    _
  $region29: #{tpu_custom_call.1} parent=0 // pred_fallthru
    _
  // Predicated region
  $region30: #{tpu_custom_call.1} parent=0 // pred_check
    _
  $region31: #{tpu_custom_call.1} parent=0 // pred_check_branch
    %3182 = sbr.rel (0) target = $region33
  $region32: #{tpu_custom_call.1} parent=0 // pred_region
    _
  $region33: #{tpu_custom_call.1} parent=0 // pred_fallthru
    _

</llo_original>
